<compile_context>
chip_gen: v7x
topology: tpu7x:2x2x1
jax: 0.10.0
libtpu: 0.0.40
codegen_flags: <defaults>
</compile_context>

<pallas_src>
import functools

import jax
import jax.numpy as jnp
from jax import lax
from jax.experimental import pallas as pl
from jax.experimental.pallas import tpu as pltpu


_LN_EPS = 1e-6
_TN = 512                      # output-column tile


def _device_defaults():
    # tm: 256 fills the 2x256^2 MXU on v6e/v7x; v5e (4x128^2, less HBM BW) keeps 128.
    tm = 256
    try:
        kind = jax.devices()[0].device_kind.lower()
        if "v5 lite" in kind or "v5e" in kind or "v5litepod" in kind:
            tm = 128
    except Exception:
        pass
    # VMEM limit: ~75% of physical capacity, capped at 96 MiB (conservative on v7x's 64 MiB).
    try:
        cap = int(getattr(pltpu.get_tpu_info(), "vmem_capacity_bytes"))
    except Exception:
        cap = 128 * 1024 * 1024 if tm == 128 else 64 * 1024 * 1024
    return tm, min(3 * cap // 4, 96 * 1024 * 1024)


_TM, _VMEM_LIMIT = _device_defaults()


def _row_tile(m):
    return m if m <= _TM else _TM


def _col_tile(n):
    return n if n <= _TN else _TN


def _cparams(*sems):
    return pltpu.CompilerParams(dimension_semantics=tuple(sems),
                                vmem_limit_bytes=_VMEM_LIMIT)


# ----------------------------- in-kernel helpers ------------------------------

def _gelu_f32(x):
    # Exact (erf-based) GELU matching torch.nn.GELU(approximate='none') via the A&S 7.1.26
    # polynomial (|err| ~1.5e-7). Denominator uses the EUP approx reciprocal (~1e-4 rel err).
    z = x * jnp.float32(0.7071067811865476)
    s = jnp.where(z >= 0.0, jnp.float32(1.0), jnp.float32(-1.0))
    za = jnp.abs(z)
    t = pl.reciprocal(jnp.float32(1.0) + jnp.float32(0.3275911) * za, approx=True)
    poly = t * (0.254829592 + t * (-0.284496736 + t * (1.421413741
            + t * (-1.453152027 + t * 1.061405429))))
    erf = s * (1.0 - poly * jnp.exp(-za * za))
    return 0.5 * x * (1.0 + erf)


def _layernorm_f32(x, lw, lb):
    mu = jnp.mean(x, axis=-1, keepdims=True)
    var = jnp.mean((x - mu) ** 2, axis=-1, keepdims=True)
    return (x - mu) * lax.rsqrt(var + _LN_EPS) * lw + lb


# ----------------------------- Pallas kernels ------------------------------

def _ln_linear_kernel(x_ref, lw_ref, lb_ref, w_ref, b_ref, o_ref, xn_ref):
    # LayerNorm computed once per row tile (j == 0) and cached in VMEM scratch; reused for
    # every output-column tile j > 0.
    @pl.when(pl.program_id(1) == 0)
    def _():
        x = x_ref[...].astype(jnp.float32)
        xn_ref[...] = _layernorm_f32(x, lw_ref[...].astype(jnp.float32),
                                     lb_ref[...].astype(jnp.float32))
    acc = jnp.dot(xn_ref[...].astype(w_ref.dtype), w_ref[...],
                  preferred_element_type=jnp.float32)
    o_ref[...] = (acc + b_ref[...].astype(jnp.float32)).astype(o_ref.dtype)


def _msda_query_kernel(x_ref, lw_ref, lb_ref, w_ref, b_ref, g_ref, qn_ref, pa_ref, *, so_dim):
    # LayerNorm(query) -> identity + ONE fused projection [sampling_offsets | attn_weights]
    # -> single-pass grouped softmax on the attention-weight columns -> packed lane-dense output.
    x = x_ref[...].astype(jnp.float32)
    xn = _layernorm_f32(x, lw_ref[...].astype(jnp.float32), lb_ref[...].astype(jnp.float32))
    qn_ref[...] = xn.astype(qn_ref.dtype)

    proj = (jnp.dot(xn.astype(w_ref.dtype), w_ref[...], preferred_element_type=jnp.float32)
            + b_ref[...].astype(jnp.float32))

    col = lax.broadcasted_iota(jnp.int32, proj.shape, 1)
    is_aw = col >= so_dim
    # Single-pass grouped softmax (one group of size lp per head).  The shift uses the global
    # row-max over all aw columns (softmax is shift-invariant per group); the group sums come
    # from one MXU matmul against a block-diagonal-ones matrix; denominator is guarded so a
    # fully-underflowed group yields 0 instead of NaN.
    masked = jnp.where(is_aw, proj, -jnp.inf)
    row_max = jnp.max(masked, axis=-1, keepdims=True)
    e = jnp.exp(jnp.where(is_aw, proj - row_max, -jnp.inf))        # exp input masked, not output
    denom = jnp.dot(e, g_ref[...], preferred_element_type=jnp.float32)
    probs = e * pl.reciprocal(jnp.maximum(denom, 1e-20), approx=True)
    pa_ref[...] = jnp.where(is_aw, probs, proj).astype(pa_ref.dtype)


def _linear_scale_res_kernel(x_ref, w_ref, b_ref, id_ref, g_ref, res_ref, o_ref):
    # o = res + gamma * (x @ w + b + identity)
    acc = jnp.dot(x_ref[...].astype(w_ref.dtype), w_ref[...], preferred_element_type=jnp.float32)
    attn = acc + b_ref[...].astype(jnp.float32) + id_ref[...].astype(jnp.float32)
    out = res_ref[...].astype(jnp.float32) + g_ref[...].astype(jnp.float32) * attn
    o_ref[...] = out.astype(o_ref.dtype)


def _linear_res_kernel(x_ref, w_ref, b_ref, res_ref, o_ref):
    # o = res + x @ w + b
    acc = jnp.dot(x_ref[...].astype(w_ref.dtype), w_ref[...], preferred_element_type=jnp.float32)
    o_ref[...] = (res_ref[...].astype(jnp.float32) + acc
                  + b_ref[...].astype(jnp.float32)).astype(o_ref.dtype)


def _dwconv_gelu_kernel(xp_ref, w_ref, b_ref, o_ref):
    # xp: (1, H+2, W+2, tc) zero-padded NHWC block, w: (9, tc) taps-major, b: (1, tc).
    # TODO(synk): tile over H rows with a 1-row halo and replace the sublane (W) shifted slices
    # with pltpu.roll so production-sized images stay within VMEM and the shifts hit the XLU.
    _, hp, wp, _ = xp_ref.shape
    h, wd = hp - 2, wp - 2
    w = w_ref[...].astype(jnp.float32)
    acc = jnp.zeros(o_ref.shape, jnp.float32)
    for dy in range(3):
        for dx in range(3):
            acc = acc + xp_ref[:, dy:dy + h, dx:dx + wd, :].astype(jnp.float32) * w[dy * 3 + dx]
    o_ref[...] = _gelu_f32(acc + b_ref[0].astype(jnp.float32)).astype(o_ref.dtype)


def _msda_sample_kernel(px_ref, py_ref, aw_ref, v_ref, o_ref, *, Hl, Wl):
    # One (batch, head) tile of one pyramid level: build the dense bilinear sampling matrix
    # with the attention weights folded in, then a single MXU matmul against the values.
    # Matches torch grid_sample(mode='bilinear', padding_mode='zeros', align_corners=False).
    px = px_ref[0, 0]                               # (Nq, P) pixel-space x
    py = py_ref[0, 0]                               # (Nq, P) pixel-space y
    aw = aw_ref[0, 0]                               # (Nq, P) attention weights
    v = v_ref[0, 0].astype(jnp.float32)             # (HW, hd)
    nq, npt = px.shape
    hw = Hl * Wl

    x0 = jnp.floor(px)
    y0 = jnp.floor(py)
    wx1 = px - x0
    wy1 = py - y0
    cols = lax.broadcasted_iota(jnp.int32, (nq, hw), 1)

    def corner_mat(xi, yi, wgt):
        valid = (xi >= 0) & (xi <= Wl - 1) & (yi >= 0) & (yi <= Hl - 1)
        xi_c = jnp.clip(xi, 0, Wl - 1).astype(jnp.int32)
        yi_c = jnp.clip(yi, 0, Hl - 1).astype(jnp.int32)
        idx = yi_c * Wl + xi_c                      # (Nq, P)
        w_all = wgt * aw * valid.astype(jnp.float32)
        acc = jnp.zeros((nq, hw), jnp.float32)
        for p in range(npt):                        # n_points is small & static
            acc = acc + jnp.where(cols == idx[:, p:p + 1], w_all[:, p:p + 1], 0.0)
        return acc

    a_mat = (corner_mat(x0, y0, (1.0 - wx1) * (1.0 - wy1))
             + corner_mat(x0 + 1.0, y0, wx1 * (1.0 - wy1))
             + corner_mat(x0, y0 + 1.0, (1.0 - wx1) * wy1)
             + corner_mat(x0 + 1.0, y0 + 1.0, wx1 * wy1))
    o_ref[0, 0] = jnp.dot(a_mat, v, preferred_element_type=jnp.float32).astype(o_ref.dtype)


# ----------------------------- pallas_call wrappers -----------------------------

def ln_linear(x, ln_w, ln_b, w, b):
    # LayerNorm over the last dim, then x_n @ w + b.  x: (..., K), w: (K, N), b: (1, N).
    shp = x.shape
    K, N = shp[-1], w.shape[1]
    x2 = x.reshape(-1, K)
    M = x2.shape[0]
    tm, tn = _row_tile(M), _col_tile(N)
    out = pl.pallas_call(
        _ln_linear_kernel,
        out_shape=jax.ShapeDtypeStruct((M, N), x.dtype),
        grid=(pl.cdiv(M, tm), pl.cdiv(N, tn)),
        in_specs=[
            pl.BlockSpec((tm, K), lambda i, j: (i, 0)),
            pl.BlockSpec((1, K), lambda i, j: (0, 0)),
            pl.BlockSpec((1, K), lambda i, j: (0, 0)),
            pl.BlockSpec((K, tn), lambda i, j: (0, j)),
            pl.BlockSpec((1, tn), lambda i, j: (0, j)),
        ],
        out_specs=pl.BlockSpec((tm, tn), lambda i, j: (i, j)),
        scratch_shapes=[pltpu.VMEM((tm, K), jnp.float32)],
        compiler_params=_cparams("parallel", "arbitrary"),
    )(x2, ln_w.reshape(1, K), ln_b.reshape(1, K), w, b)
    return out.reshape(shp[:-1] + (N,))


def msda_query_proj(x, ln_w, ln_b, so_w, so_b, aw_w, aw_b, lp):
    # Query side of MSDA: LN + one fused [offsets | attn_weights] projection + grouped softmax.
    Bb, Nq, E = x.shape
    x2 = x.reshape(-1, E)
    M = x2.shape[0]
    so_dim, aw_dim = so_w.shape[1], aw_w.shape[1]
    P = so_dim + aw_dim
    w_cat = jnp.concatenate([so_w, aw_w], axis=1)
    b_cat = jnp.concatenate([so_b, aw_b], axis=1)
    # Block-diagonal ones over the attention-weight columns (per-head groups of size lp);
    # e @ gmat yields each aw column's group sum in one MXU pass.
    col = jnp.arange(P, dtype=jnp.int32)
    is_aw = col >= so_dim
    gid = jnp.where(is_aw, (col - so_dim) // lp, -1)
    gmat = ((gid[:, None] == gid[None, :]) & is_aw[:, None]).astype(jnp.float32)

    tm = _row_tile(M)
    kern = functools.partial(_msda_query_kernel, so_dim=so_dim)
    qn, pa = pl.pallas_call(
        kern,
        out_shape=(jax.ShapeDtypeStruct((M, E), x.dtype),
                   jax.ShapeDtypeStruct((M, P), x.dtype)),
        grid=(pl.cdiv(M, tm),),
        in_specs=[
            pl.BlockSpec((tm, E), lambda i: (i, 0)),
            pl.BlockSpec((1, E), lambda i: (0, 0)),
            pl.BlockSpec((1, E), lambda i: (0, 0)),
            pl.BlockSpec((E, P), lambda i: (0, 0)),
            pl.BlockSpec((1, P), lambda i: (0, 0)),
            pl.BlockSpec((P, P), lambda i: (0, 0)),
        ],
        out_specs=(pl.BlockSpec((tm, E), lambda i: (i, 0)),
                   pl.BlockSpec((tm, P), lambda i: (i, 0))),
        compiler_params=_cparams("parallel"),
    )(x2, ln_w.reshape(1, E), ln_b.reshape(1, E), w_cat, b_cat, gmat)
    off = pa[:, :so_dim]
    aw = pa[:, so_dim:]
    return qn.reshape(Bb, Nq, E), off.reshape(Bb, Nq, so_dim), aw.reshape(Bb, Nq, aw_dim)


def linear_scale_residual(x, w, b, identity, gamma, outer):
    # outer + gamma * (x @ w + b + identity)
    shp = outer.shape
    K, N = x.shape[-1], w.shape[1]
    x2 = x.reshape(-1, K)
    id2 = identity.reshape(-1, N)
    res2 = outer.reshape(-1, N)
    M = x2.shape[0]
    tm, tn = _row_tile(M), _col_tile(N)
    out = pl.pallas_call(
        _linear_scale_res_kernel,
        out_shape=jax.ShapeDtypeStruct((M, N), outer.dtype),
        grid=(pl.cdiv(M, tm), pl.cdiv(N, tn)),
        in_specs=[
            pl.BlockSpec((tm, K), lambda i, j: (i, 0)),
            pl.BlockSpec((K, tn), lambda i, j: (0, j)),
            pl.BlockSpec((1, tn), lambda i, j: (0, j)),
            pl.BlockSpec((tm, tn), lambda i, j: (i, j)),
            pl.BlockSpec((1, tn), lambda i, j: (0, j)),
            pl.BlockSpec((tm, tn), lambda i, j: (i, j)),
        ],
        out_specs=pl.BlockSpec((tm, tn), lambda i, j: (i, j)),
        compiler_params=_cparams("parallel", "parallel"),
    )(x2, w, b, id2, gamma.reshape(1, N), res2)
    return out.reshape(shp)


def linear_residual(x, w, b, res):
    # res + x @ w + b
    shp = res.shape
    K, N = x.shape[-1], w.shape[1]
    x2 = x.reshape(-1, K)
    res2 = res.reshape(-1, N)
    M = x2.shape[0]
    tm, tn = _row_tile(M), _col_tile(N)
    out = pl.pallas_call(
        _linear_res_kernel,
        out_shape=jax.ShapeDtypeStruct((M, N), res.dtype),
        grid=(pl.cdiv(M, tm), pl.cdiv(N, tn)),
        in_specs=[
            pl.BlockSpec((tm, K), lambda i, j: (i, 0)),
            pl.BlockSpec((K, tn), lambda i, j: (0, j)),
            pl.BlockSpec((1, tn), lambda i, j: (0, j)),
            pl.BlockSpec((tm, tn), lambda i, j: (i, j)),
        ],
        out_specs=pl.BlockSpec((tm, tn), lambda i, j: (i, j)),
        compiler_params=_cparams("parallel", "parallel"),
    )(x2, w, b, res2)
    return out.reshape(shp)


def dwconv3x3_gelu(x_nhwc, w9c, b1c):
    Bb, H, W, C = x_nhwc.shape
    tc = C if C <= 128 else 128
    # TODO(synk): fold the zero padding into the kernel (boundary masking) and tile over H rows
    # with a 1-row halo for production resolutions.
    xp = jnp.pad(x_nhwc, ((0, 0), (1, 1), (1, 1), (0, 0)))
    return pl.pallas_call(
        _dwconv_gelu_kernel,
        out_shape=jax.ShapeDtypeStruct((Bb, H, W, C), x_nhwc.dtype),
        grid=(Bb, pl.cdiv(C, tc)),
        in_specs=[
            pl.BlockSpec((1, H + 2, W + 2, tc), lambda bk, ck: (bk, 0, 0, ck)),
            pl.BlockSpec((9, tc), lambda bk, ck: (0, ck)),
            pl.BlockSpec((1, tc), lambda bk, ck: (0, ck)),
        ],
        out_specs=pl.BlockSpec((1, H, W, tc), lambda bk, ck: (bk, 0, 0, ck)),
        compiler_params=_cparams("parallel", "parallel"),
    )(xp, w9c, b1c)


def msda_sample_level(v_l, px, py, aw_l, Hl, Wl):
    # v_l: (B, heads, HW, hd); px/py/aw_l: (B, heads, Nq, P). Returns (B, heads, Nq, hd) f32,
    # already weighted by the attention weights.
    Bb, Hh, HW, hd = v_l.shape
    Nq, P = px.shape[2], px.shape[3]
    kern = functools.partial(_msda_sample_kernel, Hl=Hl, Wl=Wl)
    return pl.pallas_call(
        kern,
        out_shape=jax.ShapeDtypeStruct((Bb, Hh, Nq, hd), jnp.float32),
        grid=(Bb, Hh),
        in_specs=[
            pl.BlockSpec((1, 1, Nq, P), lambda b, h: (b, h, 0, 0)),
            pl.BlockSpec((1, 1, Nq, P), lambda b, h: (b, h, 0, 0)),
            pl.BlockSpec((1, 1, Nq, P), lambda b, h: (b, h, 0, 0)),
            pl.BlockSpec((1, 1, HW, hd), lambda b, h: (b, h, 0, 0)),
        ],
        out_specs=pl.BlockSpec((1, 1, Nq, hd), lambda b, h: (b, h, 0, 0)),
        compiler_params=_cparams("parallel", "parallel"),
    )(px, py, aw_l, v_l)


# ----------------------------- module forward -------------------------------

def dwconv_module_gelu(x, w9c, b1c, H, W):
    # Mirrors DWConv.forward (4 pyramid levels); GELU fused into each level's kernel.
    Bb, N, C = x.shape
    c1 = H * W
    c2 = (H // 2) * (W // 2)
    c3 = (H // 4) * (H // 4)           # NOTE: reproduces the reference code (uses H twice)
    splits = [
        (x[:, :c1], H, W),
        (x[:, c1:c1 + c2], H // 2, W // 2),
        (x[:, c1 + c2:c1 + c2 + c3], H // 4, W // 4),
        (x[:, c1 + c2 + c3:], H // 8, W // 8),
    ]
    outs = []
    for xs, h, w in splits:
        y = dwconv3x3_gelu(xs.reshape(Bb, h, w, C), w9c, b1c)
        outs.append(y.reshape(Bb, h * w, C))
    # TODO(synk): batch the 4 levels into one pallas_call (scalar-prefetched level offsets) to
    # remove per-level launch overhead and the concat pass.
    return jnp.concatenate(outs, axis=1)


def deformable_attention(p, qn_w, qn_b, fn_w, fn_b, gamma, query, feat,
                         reference_points, spatial_shapes, heads, points):
    # mmcv MultiScaleDeformableAttention (batch_first=True, eval-mode dropout = identity).
    levels = len(spatial_shapes)
    Bb, Nq, E = query.shape
    lp = levels * points

    q_norm, off, aw = msda_query_proj(query, qn_w, qn_b, p['so_w'], p['so_b'],
                                      p['aw_w'], p['aw_b'], lp)
    v = ln_linear(feat, fn_w, fn_b, p['vp_w'], p['vp_b'])
    Nv, Ev = v.shape[1], v.shape[2]
    hd = Ev // heads
    v = jnp.transpose(v.reshape(Bb, Nv, heads, hd), (0, 2, 1, 3))       # (B, Hh, Nv, hd)

    off = off.reshape(Bb, Nq, heads, levels, points, 2).astype(jnp.float32)
    aw = aw.reshape(Bb, Nq, heads, levels, points).astype(jnp.float32)

    # offset_normalizer = [W, H] per level
    norm = jnp.array([[w, h] for (h, w) in spatial_shapes], dtype=jnp.float32)
    loc = (reference_points[:, :, None, :, None, :].astype(jnp.float32)
           + off / norm[None, None, None, :, None, :])                  # (B,Nq,Hh,L,P,2)

    out = jnp.zeros((Bb, heads, Nq, hd), jnp.float32)
    start = 0
    # TODO(synk): the per-level loop and coordinate transposes remain XLA; at production
    # resolutions replace the one-hot-matmul sampler with a manual-DMA gather kernel and fuse
    # all levels into a single pallas_call.
    for lvl, (Hl, Wl) in enumerate(spatial_shapes):
        HW = Hl * Wl
        v_l = v[:, :, start:start + HW]
        start += HW
        # grid_sample(align_corners=False): pixel coord = loc * size - 0.5
        px = jnp.transpose(loc[:, :, :, lvl, :, 0] * Wl - 0.5, (0, 2, 1, 3))
        py = jnp.transpose(loc[:, :, :, lvl, :, 1] * Hl - 0.5, (0, 2, 1, 3))
        aw_l = jnp.transpose(aw[:, :, :, lvl, :], (0, 2, 1, 3))
        out = out + msda_sample_level(v_l, px, py, aw_l, Hl, Wl)
    out = jnp.transpose(out, (0, 2, 1, 3)).reshape(Bb, Nq, Ev).astype(query.dtype)

    # Fused: output_proj + bias + MSDA identity (q_norm) + gamma scale + outer residual.
    return linear_scale_residual(out, p['op_w'], p['op_b'], q_norm, gamma, query)


def injector_forward(p, query, reference_points, feat, spatial_shapes, heads, points):
    # query + gamma * MSDA(query_norm(query), feat_norm(feat))
    return deformable_attention(p['attn'], p['qn_w'], p['qn_b'], p['fn_w'], p['fn_b'],
                                p['gamma'], query, feat, reference_points, spatial_shapes,
                                heads, points)


def extractor_forward(p, query, reference_points, feat, spatial_shapes, H, W, heads, points):
    E = query.shape[-1]
    ones = jnp.ones((1, E), query.dtype)
    # query + attn  (gamma == 1)
    query = deformable_attention(p['attn'], p['qn_w'], p['qn_b'], p['fn_w'], p['fn_b'],
                                 ones, query, feat, reference_points, spatial_shapes,
                                 heads, points)
    ffn = p['ffn']
    h = ln_linear(query, p['ffn_n_w'], p['ffn_n_b'], ffn['fc1_w'], ffn['fc1_b'])   # ffn_norm + fc1
    h = dwconv_module_gelu(h, ffn['dw_w'], ffn['dw_b'], H, W)                      # dwconv + GELU
    return linear_residual(h, ffn['fc2_w'], ffn['fc2_b'], query)                   # fc2 + residual


def interaction_block_forward(params, x, c, blocks, deform_inputs1, deform_inputs2,
                              H, W, T, num_heads, n_points):
    Bb, L, D = x.shape
    # TODO(synk): fold these frame-interleave transposes into the index_map of the adjacent
    # kernels; for now they remain XLA copies.
    xg = x.reshape(Bb, T, L // T, D).transpose(0, 2, 1, 3).reshape(Bb, L // T, D * T)
    xg = injector_forward(params['inj'], xg, deform_inputs1[0], c, deform_inputs1[1],
                          num_heads, n_points)
    x = xg.reshape(Bb, L // T, T, D).transpose(0, 2, 1, 3).reshape(Bb, L, D)
    for blk in blocks:               # external ViT blocks are call-time inputs (empty here)
        x = blk(x, H, W)
    xg = x.reshape(Bb, T, L // T, D).transpose(0, 2, 1, 3).reshape(Bb, L // T, D * T)
    c = extractor_forward(params['ext'], c, deform_inputs2[0], xg, deform_inputs2[1],
                          H, W, num_heads, n_points)
    # extra_extractor=False -> no extra extractors
    x = xg.reshape(Bb, L // T, T, D).transpose(0, 2, 1, 3).reshape(Bb, L, D)
    return x, c


# ----------------------------- parameter init -------------------------------

def _init_linear(key, fan_in, fan_out, scale=0.02):
    kw, kb = jax.random.split(key)
    w = jax.random.normal(kw, (fan_in, fan_out), jnp.float32) * scale
    b = jax.random.normal(kb, (1, fan_out), jnp.float32) * scale
    return w, b


def init_msda_params(key, embed, heads, levels, points, ratio=1.0):
    ks = jax.random.split(key, 4)
    ev = int(embed * ratio)
    vp_w, vp_b = _init_linear(ks[0], embed, ev)
    so_w, so_b = _init_linear(ks[1], embed, heads * levels * points * 2)
    aw_w, aw_b = _init_linear(ks[2], embed, heads * levels * points)
    op_w, op_b = _init_linear(ks[3], ev, embed)
    return dict(vp_w=vp_w, vp_b=vp_b, so_w=so_w, so_b=so_b,
                aw_w=aw_w, aw_b=aw_b, op_w=op_w, op_b=op_b)


def init_interaction_block_params(key, dim, num_frames, num_heads, n_points,
                                  cffn_ratio=1.0, init_values=0.5, deform_ratio=1.0):
    E = dim * num_frames
    hidden = int(E * cffn_ratio)
    k_inj, k_ext, k_fc1, k_dw, k_fc2 = jax.random.split(key, 5)
    ones = jnp.ones((E,), jnp.float32)
    zeros = jnp.zeros((E,), jnp.float32)

    inj = dict(
        qn_w=ones, qn_b=zeros, fn_w=ones, fn_b=zeros,
        gamma=init_values * jnp.ones((1, E), jnp.float32),
        attn=init_msda_params(k_inj, E, num_heads, 4, n_points, deform_ratio),
    )
    kdw_w, kdw_b = jax.random.split(k_dw)
    fc1_w, fc1_b = _init_linear(k_fc1, E, hidden)
    fc2_w, fc2_b = _init_linear(k_fc2, hidden, E)
    ext = dict(
        qn_w=ones, qn_b=zeros, fn_w=ones, fn_b=zeros,
        attn=init_msda_params(k_ext, E, num_heads, 1, n_points, deform_ratio),
        ffn_n_w=jnp.ones((E,), jnp.float32), ffn_n_b=jnp.zeros((E,), jnp.float32),
        ffn=dict(
            fc1_w=fc1_w, fc1_b=fc1_b,
            dw_w=jax.random.normal(kdw_w, (9, hidden), jnp.float32) * 0.1,
            dw_b=jax.random.normal(kdw_b, (1, hidden), jnp.float32) * 0.1,
            fc2_w=fc2_w, fc2_b=fc2_b,
        ),
    )
    return dict(inj=inj, ext=ext)


# ----------------------------------- main ------------------------------------

if __name__ == "__main__":
    key = jax.random.PRNGKey(0)
    B, D, T = 2, 16, 2                 # batch, per-frame dim, num_frames
    E = D * T                          # 32 = embed dim of the injector/extractor
    num_heads, n_points = 8, 4
    Hc = Wc = 8                        # pyramid base resolution of c (used by ConvFFN/DWConv)
    Hv = Wv = 4                        # per-frame ViT token grid for x
    L = T * Hv * Wv                    # 32 tokens in x

    spatial_shapes1 = ((Hc, Wc), (Hc // 2, Wc // 2), (Hc // 4, Wc // 4), (Hc // 8, Wc // 8))
    level_start1 = (0, 64, 80, 84)
    spatial_shapes2 = ((Hv, Wv),)
    level_start2 = (0,)
    Lc = sum(h * w for h, w in spatial_shapes1)   # 85 tokens in c

    ks = jax.random.split(key, 6)
    x = jax.random.normal(ks[0], (B, L, D), jnp.float32)
    c = jax.random.normal(ks[1], (B, Lc, E), jnp.float32)
    ref1 = jax.random.uniform(ks[2], (B, L // T, 1, 2), jnp.float32)
    ref2 = jax.random.uniform(ks[3], (B, Lc, 1, 2), jnp.float32)
    deform_inputs1 = (ref1, spatial_shapes1, level_start1)   # level_start_index unused by the
    deform_inputs2 = (ref2, spatial_shapes2, level_start2)   # pure (non-CUDA) MSDA path

    params = init_interaction_block_params(ks[4], dim=D, num_frames=T, num_heads=num_heads,
                                           n_points=n_points, cffn_ratio=1.0,
                                           init_values=0.5, deform_ratio=1.0)

    x_out, c_out = interaction_block_forward(params, x, c, (), deform_inputs1, deform_inputs2,
                                             Hc, Wc, T=T, num_heads=num_heads, n_points=n_points)
    jax.block_until_ready((x_out, c_out))
    assert x_out.shape == (B, L, D) and c_out.shape == (B, Lc, E)
    assert x_out.dtype == x.dtype and c_out.dtype == c.dtype
    assert bool(jnp.all(jnp.isfinite(x_out))) and bool(jnp.all(jnp.isfinite(c_out)))
    print("KERNEL_OK")
</pallas_src>

<mosaic_0001>
module attributes {stable_mosaic.version = 11 : i64} {
  func.func @_msda_query_kernel(%arg0: i32, %arg1: memref<32x32xf32, #tpu.memory_space<vmem>>, %arg2: memref<1x32xf32, #tpu.memory_space<vmem>>, %arg3: memref<1x32xf32, #tpu.memory_space<vmem>>, %arg4: memref<32x384xf32, #tpu.memory_space<vmem>>, %arg5: memref<1x384xf32, #tpu.memory_space<vmem>>, %arg6: memref<384x384xf32, #tpu.memory_space<vmem>>, %arg7: memref<32x32xf32, #tpu.memory_space<vmem>>, %arg8: memref<32x384xf32, #tpu.memory_space<vmem>>) attributes {dimension_semantics = [#tpu.dimension_semantics<parallel>], iteration_bounds = array<i64: 1>, scalar_prefetch = 0 : i64, scratch_operands = 0 : i64, tpu.core_type = #tpu.core_type<tc>, window_params = [{transform_indices = @transform_0, window_bounds = array<i64: 32, 32>}, {pipeline_mode = #tpu.pipeline_mode<synchronous>, transform_indices = @transform_1, window_bounds = array<i64: 1, 32>}, {pipeline_mode = #tpu.pipeline_mode<synchronous>, transform_indices = @transform_2, window_bounds = array<i64: 1, 32>}, {pipeline_mode = #tpu.pipeline_mode<synchronous>, transform_indices = @transform_3, window_bounds = array<i64: 32, 384>}, {pipeline_mode = #tpu.pipeline_mode<synchronous>, transform_indices = @transform_4, window_bounds = array<i64: 1, 384>}, {pipeline_mode = #tpu.pipeline_mode<synchronous>, transform_indices = @transform_5, window_bounds = array<i64: 384, 384>}, {transform_indices = @transform_6, window_bounds = array<i64: 32, 32>}, {transform_indices = @transform_7, window_bounds = array<i64: 32, 384>}]} {
    %c0 = arith.constant 0 : index
    %c0_0 = arith.constant 0 : index
    %0 = vector.load %arg1[%c0, %c0_0] : memref<32x32xf32, #tpu.memory_space<vmem>>, vector<32x32xf32>
    %c0_1 = arith.constant 0 : index
    %c0_2 = arith.constant 0 : index
    %1 = vector.load %arg2[%c0_1, %c0_2] : memref<1x32xf32, #tpu.memory_space<vmem>>, vector<1x32xf32>
    %c0_3 = arith.constant 0 : index
    %c0_4 = arith.constant 0 : index
    %2 = vector.load %arg3[%c0_3, %c0_4] : memref<1x32xf32, #tpu.memory_space<vmem>>, vector<1x32xf32>
    %cst = arith.constant dense<0.000000e+00> : vector<32xf32>
    %3 = vector.multi_reduction <add>, %0, %cst [1] : vector<32x32xf32> to vector<32xf32>
    %4 = vector.shape_cast %3 : vector<32xf32> to vector<32x1xf32>
    %cst_5 = arith.constant 3.200000e+01 : f32
    %5 = vector.broadcast %cst_5 : f32 to vector<32x1xf32>
    %6 = arith.divf %4, %5 : vector<32x1xf32>
    %7 = vector.broadcast %6 : vector<32x1xf32> to vector<32x32xf32>
    %8 = arith.subf %0, %7 : vector<32x32xf32>
    %9 = arith.mulf %8, %8 : vector<32x32xf32>
    %cst_6 = arith.constant dense<0.000000e+00> : vector<32xf32>
    %10 = vector.multi_reduction <add>, %9, %cst_6 [1] : vector<32x32xf32> to vector<32xf32>
    %11 = vector.shape_cast %10 : vector<32xf32> to vector<32x1xf32>
    %cst_7 = arith.constant 3.200000e+01 : f32
    %12 = vector.broadcast %cst_7 : f32 to vector<32x1xf32>
    %13 = arith.divf %11, %12 : vector<32x1xf32>
    %14 = vector.broadcast %6 : vector<32x1xf32> to vector<32x32xf32>
    %15 = arith.subf %0, %14 : vector<32x32xf32>
    %cst_8 = arith.constant 9.99999997E-7 : f32
    %16 = vector.broadcast %cst_8 : f32 to vector<32x1xf32>
    %17 = arith.addf %13, %16 : vector<32x1xf32>
    %18 = math.rsqrt %17 : vector<32x1xf32>
    %19 = vector.broadcast %18 : vector<32x1xf32> to vector<32x32xf32>
    %20 = arith.mulf %15, %19 : vector<32x32xf32>
    %21 = vector.broadcast %1 : vector<1x32xf32> to vector<32x32xf32>
    %22 = arith.mulf %20, %21 : vector<32x32xf32>
    %23 = vector.broadcast %2 : vector<1x32xf32> to vector<32x32xf32>
    %24 = arith.addf %22, %23 : vector<32x32xf32>
    %c0_9 = arith.constant 0 : index
    %c0_10 = arith.constant 0 : index
    %25 = vector.load %arg7[%c0_9, %c0_10] : memref<32x32xf32, #tpu.memory_space<vmem>>, vector<32x32xf32>
    tpu.vector_store %arg7[%c0_9, %c0_10], %24 {strides = array<i32>} : memref<32x32xf32, #tpu.memory_space<vmem>>, vector<32x32xf32>,
    %c0_11 = arith.constant 0 : index
    %c0_12 = arith.constant 0 : index
    %26 = vector.load %arg4[%c0_11, %c0_12] : memref<32x384xf32, #tpu.memory_space<vmem>>, vector<32x384xf32>
    %cst_13 = arith.constant dense<0.000000e+00> : vector<32x384xf32>
    %27 = tpu.matmul %24, %26, %cst_13 {dimension_numbers = #tpu.dot_dimension_numbers<[1], [0], [0], [1], [0, 0, 1, 1], [], []>} : vector<32x32xf32>, vector<32x384xf32>, vector<32x384xf32> -> vector<32x384xf32>
    %c0_14 = arith.constant 0 : index
    %c0_15 = arith.constant 0 : index
    %28 = vector.load %arg5[%c0_14, %c0_15] : memref<1x384xf32, #tpu.memory_space<vmem>>, vector<1x384xf32>
    %29 = vector.broadcast %28 : vector<1x384xf32> to vector<32x384xf32>
    %30 = arith.addf %27, %29 : vector<32x384xf32>
    %31 = tpu.iota {dimensions = array<i32: 1>} : vector<32x384xi32>
    %c256_i32 = arith.constant 256 : i32
    %32 = vector.broadcast %c256_i32 : i32 to vector<32x384xi32>
    %33 = arith.cmpi sge, %31, %32 : vector<32x384xi32>
    %cst_16 = arith.constant 0xFF800000 : f32
    %34 = vector.broadcast %cst_16 : f32 to vector<32x384xf32>
    %35 = arith.select %33, %30, %34 : vector<32x384xi1>, vector<32x384xf32>
    %cst_17 = arith.constant dense<0xFF800000> : vector<32xf32>
    %36 = vector.multi_reduction <maximumf>, %35, %cst_17 [1] : vector<32x384xf32> to vector<32xf32>
    %37 = vector.shape_cast %36 : vector<32xf32> to vector<32x1xf32>
    %38 = vector.broadcast %37 : vector<32x1xf32> to vector<32x384xf32>
    %39 = arith.subf %30, %38 : vector<32x384xf32>
    %cst_18 = arith.constant 0xFF800000 : f32
    %40 = vector.broadcast %cst_18 : f32 to vector<32x384xf32>
    %41 = arith.select %33, %39, %40 : vector<32x384xi1>, vector<32x384xf32>
    %42 = math.exp %41 : vector<32x384xf32>
    %c0_19 = arith.constant 0 : index
    %c0_20 = arith.constant 0 : index
    %43 = vector.load %arg6[%c0_19, %c0_20] : memref<384x384xf32, #tpu.memory_space<vmem>>, vector<384x384xf32>
    %cst_21 = arith.constant dense<0.000000e+00> : vector<32x384xf32>
    %44 = tpu.matmul %42, %43, %cst_21 {dimension_numbers = #tpu.dot_dimension_numbers<[1], [0], [0], [1], [0, 0, 1, 1], [], []>} : vector<32x384xf32>, vector<384x384xf32>, vector<32x384xf32> -> vector<32x384xf32>
    %cst_22 = arith.constant 9.99999968E-21 : f32
    %45 = vector.broadcast %cst_22 : f32 to vector<32x384xf32>
    %46 = arith.maximumf %44, %45 : vector<32x384xf32>
    %47 = tpu.reciprocal %46 {approx = true} : vector<32x384xf32> -> vector<32x384xf32>
    %48 = arith.mulf %42, %47 : vector<32x384xf32>
    %49 = arith.select %33, %48, %30 : vector<32x384xi1>, vector<32x384xf32>
    %c0_23 = arith.constant 0 : index
    %c0_24 = arith.constant 0 : index
    %50 = vector.load %arg8[%c0_23, %c0_24] : memref<32x384xf32, #tpu.memory_space<vmem>>, vector<32x384xf32>
    tpu.vector_store %arg8[%c0_23, %c0_24], %49 {strides = array<i32>} : memref<32x384xf32, #tpu.memory_space<vmem>>, vector<32x384xf32>,
    return
  }
  func.func @transform_0(%arg0: i32) -> (i32, i32) {
    %c0_i32 = arith.constant 0 : i32
    %c0_i32_0 = arith.constant 0 : i32
    return %arg0, %c0_i32 : i32, i32
  }
  func.func @transform_1(%arg0: i32) -> (i32, i32) {
    %c0_i32 = arith.constant 0 : i32
    %c0_i32_0 = arith.constant 0 : i32
    %c0_i32_1 = arith.constant 0 : i32
    return %c0_i32, %c0_i32_0 : i32, i32
  }
  func.func @transform_2(%arg0: i32) -> (i32, i32) {
    %c0_i32 = arith.constant 0 : i32
    %c0_i32_0 = arith.constant 0 : i32
    %c0_i32_1 = arith.constant 0 : i32
    return %c0_i32, %c0_i32_0 : i32, i32
  }
  func.func @transform_3(%arg0: i32) -> (i32, i32) {
    %c0_i32 = arith.constant 0 : i32
    %c0_i32_0 = arith.constant 0 : i32
    %c0_i32_1 = arith.constant 0 : i32
    return %c0_i32, %c0_i32_0 : i32, i32
  }
  func.func @transform_4(%arg0: i32) -> (i32, i32) {
    %c0_i32 = arith.constant 0 : i32
    %c0_i32_0 = arith.constant 0 : i32
    %c0_i32_1 = arith.constant 0 : i32
    return %c0_i32, %c0_i32_0 : i32, i32
  }
  func.func @transform_5(%arg0: i32) -> (i32, i32) {
    %c0_i32 = arith.constant 0 : i32
    %c0_i32_0 = arith.constant 0 : i32
    %c0_i32_1 = arith.constant 0 : i32
    return %c0_i32, %c0_i32_0 : i32, i32
  }
  func.func @transform_6(%arg0: i32) -> (i32, i32) {
    %c0_i32 = arith.constant 0 : i32
    %c0_i32_0 = arith.constant 0 : i32
    return %arg0, %c0_i32 : i32, i32
  }
  func.func @transform_7(%arg0: i32) -> (i32, i32) {
    %c0_i32 = arith.constant 0 : i32
    %c0_i32_0 = arith.constant 0 : i32
    return %arg0, %c0_i32 : i32, i32
  }
}

</mosaic_0001>

<llo_original>
// kernel: tpu_custom_call.1
$region0: #{tpu_custom_call.1}
  #allocation0 [shape = 'u32[]', space=smem, size = 0x4, offset = 0x4, fixed_abs, tag = 'smem constant byte address 0x4 - core index']
  #allocation1 [shape = 'u32[144,128]{1,0:T(1,128)}', space=vmem, size = 0x12000, scoped, tag = 'internal scratch']
  %s0 = inlined_call_operand.hbm [shape: f32[32,32], index: 0, kind: input, shape index: {}]
  %s1 = inlined_call_operand.vmem [shape: f32[1,32], index: 1, kind: input, shape index: {}]
  %s2 = inlined_call_operand.vmem [shape: f32[1,32], index: 2, kind: input, shape index: {}]
  %s3 = inlined_call_operand.hbm [shape: f32[32,384], index: 3, kind: input, shape index: {}]
  %s4 = inlined_call_operand.vmem [shape: f32[1,384], index: 4, kind: input, shape index: {}]
  %s5 = inlined_call_operand.hbm [shape: f32[384,384], index: 5, kind: input, shape index: {}]
  %s6 = inlined_call_operand.hbm [shape: f32[32,32], index: 6, kind: output, shape index: {0}]
  %s7 = inlined_call_operand.hbm [shape: f32[32,384], index: 7, kind: output, shape index: {1}]
  %8 = xla_tuple %s6, %s7
  %s9 = sld [smem:[#allocation0]]
  $region54: #{tpu_custom_call.1} parent=0
    _
  %s11 = ssub.s32 1, %s9
  %s12 = scalar_select 0, %s11, %s9
  $region1: #{tpu_custom_call.1} parent=0
    #allocation2 [shape = 'u8[16384]{0}', space=vmem, size = 0x4000, scoped, tag = 'input window, operand 0, single buffered']
    #allocation3 [shape = 's32[1]{0}', space=sflag, size = 0x4, scoped, tag = 'scoped memory for tpu_custom_call.1']
    #allocation4 [shape = 's32[1]{0}', space=sflag, size = 0x4, scoped, tag = 'scoped memory for tpu_custom_call.1']
    #allocation5 [shape = 'u8[49152]{0}', space=vmem, size = 0xc000, scoped, tag = 'input window, operand 3, single buffered']
    #allocation6 [shape = 's32[1]{0}', space=sflag, size = 0x4, scoped, tag = 'scoped memory for tpu_custom_call.1']
    #allocation7 [shape = 'u8[589824]{0}', space=vmem, size = 0x90000, scoped, tag = 'input window, operand 5, single buffered']
    #allocation8 [shape = 'u8[16384]{0}', space=vmem, size = 0x4000, scoped, tag = 'output window, operand 0, single buffered']
    #allocation9 [shape = 'u8[49152]{0}', space=vmem, size = 0xc000, scoped, tag = 'output window, operand 1, single buffered']
    #allocation10 [shape = 's32[1]{0}', space=sflag, size = 0x4, scoped, tag = 'scoped memory for tpu_custom_call.1']
    %13 = vsyncpa [#allocation3], 0
    %14 = vsyncpa [#allocation6], 0
    %15 = vsyncpa [#allocation4], 0
    %16 = vsyncpa [#allocation10], 0
    // Predicated region
    $region2: #{tpu_custom_call.1} parent=1 // pred_check
      _
    $region3: #{tpu_custom_call.1} parent=1 // pred_check_branch
      %18 = sbr.rel (0) target = $region5
    $region4: #{tpu_custom_call.1} parent=1 // pred_region
      %s20 = ssub.s32 512, 512
      %21 = vsyncadd [#allocation3], %s20
      %s22 = sshll.u32 [#allocation2], 4
      %s23 = int_to_ptr.vmem [resolvable:$true] %s22
      %28 = dma.hbm_to_vmem [thread:$0]  %s0, 512, %s23, [#allocation3], 128, 128, 8
    $region5: #{tpu_custom_call.1} parent=1 // pred_fallthru
      _
    // Predicated region
    $region6: #{tpu_custom_call.1} parent=1 // pred_check
      _
    $region7: #{tpu_custom_call.1} parent=1 // pred_check_branch
      %30 = sbr.rel (0) target = $region9
    $region8: #{tpu_custom_call.1} parent=1 // pred_region
      _
    $region9: #{tpu_custom_call.1} parent=1 // pred_fallthru
      _
    // Predicated region
    $region10: #{tpu_custom_call.1} parent=1 // pred_check
      _
    $region11: #{tpu_custom_call.1} parent=1 // pred_check_branch
      %32 = sbr.rel (0) target = $region13
    $region12: #{tpu_custom_call.1} parent=1 // pred_region
      _
    $region13: #{tpu_custom_call.1} parent=1 // pred_fallthru
      _
    // Predicated region
    $region14: #{tpu_custom_call.1} parent=1 // pred_check
      _
    $region15: #{tpu_custom_call.1} parent=1 // pred_check_branch
      %34 = sbr.rel (0) target = $region17
    $region16: #{tpu_custom_call.1} parent=1 // pred_region
      %s36 = ssub.s32 1536, 1536
      %37 = vsyncadd [#allocation6], %s36
      %s38 = sshll.u32 [#allocation5], 4
      %s39 = int_to_ptr.vmem [resolvable:$true] %s38
      %44 = dma.hbm_to_vmem [thread:$0]  %s3, 1536, %s39, [#allocation6], 384, 384, 24
    $region17: #{tpu_custom_call.1} parent=1 // pred_fallthru
      _
    // Predicated region
    $region18: #{tpu_custom_call.1} parent=1 // pred_check
      _
    $region19: #{tpu_custom_call.1} parent=1 // pred_check_branch
      %46 = sbr.rel (0) target = $region21
    $region20: #{tpu_custom_call.1} parent=1 // pred_region
      _
    $region21: #{tpu_custom_call.1} parent=1 // pred_fallthru
      _
    // Predicated region
    $region22: #{tpu_custom_call.1} parent=1 // pred_check
      _
    $region23: #{tpu_custom_call.1} parent=1 // pred_check_branch
      %48 = sbr.rel (0) target = $region25
    $region24: #{tpu_custom_call.1} parent=1 // pred_region
      %s50 = ssub.s32 18432, 18432
      %51 = vsyncadd [#allocation6], %s50
      %s52 = sshll.u32 [#allocation7], 4
      %s53 = int_to_ptr.vmem [resolvable:$true] %s52
      %58 = dma.hbm_to_vmem [thread:$0]  %s5, 18432, %s53, [#allocation6], 384, 384, 24
    $region25: #{tpu_custom_call.1} parent=1 // pred_fallthru
      _
    // Predicated region
    $region26: #{tpu_custom_call.1} parent=1 // pred_check
      _
    $region27: #{tpu_custom_call.1} parent=1 // pred_check_branch
      %60 = sbr.rel (0) target = $region29
    $region28: #{tpu_custom_call.1} parent=1 // pred_region
      %61 = dma.done [#allocation3], 512
    $region29: #{tpu_custom_call.1} parent=1 // pred_fallthru
      _
    // Predicated region
    $region30: #{tpu_custom_call.1} parent=1 // pred_check
      _
    $region31: #{tpu_custom_call.1} parent=1 // pred_check_branch
      %63 = sbr.rel (0) target = $region33
    $region32: #{tpu_custom_call.1} parent=1 // pred_region
      %64 = dma.done [#allocation6], 1536
    $region33: #{tpu_custom_call.1} parent=1 // pred_fallthru
      _
    // Predicated region
    $region34: #{tpu_custom_call.1} parent=1 // pred_check
      _
    $region35: #{tpu_custom_call.1} parent=1 // pred_check_branch
      %66 = sbr.rel (0) target = $region37
    $region36: #{tpu_custom_call.1} parent=1 // pred_region
      %67 = dma.done [#allocation6], 18432
    $region37: #{tpu_custom_call.1} parent=1 // pred_fallthru
      _
    %v68 = vld [vmem:[#allocation2] sm:$0xff]
    %v69 = vld [vmem:[#allocation2 + $0x8] sm:$0xff]
    %v70 = vld [vmem:[#allocation2 + $0x10] sm:$0xff]
    %v71 = vld [vmem:[#allocation2 + $0x18] sm:$0xff]
    %v72 = vld [vmem:[%s1] sm:$0x1]
    %v73 = vld [vmem:[%s2] sm:$0x1]
    %vm74 = vcmask 261120
    %v75 = vsel %vm74, %v68, 0.0
    %76 = vadd.xlane.f32.xlu0 %v75
    %v77 = vpop.xlane.xlu0 %76
    %v78 = vsel %vm74, %v69, 0.0
    %79 = vadd.xlane.f32.xlu0 %v78
    %v80 = vpop.xlane.xlu0 %79
    %v81 = vsel %vm74, %v70, 0.0
    %82 = vadd.xlane.f32.xlu0 %v81
    %v83 = vpop.xlane.xlu0 %82
    %v84 = vsel %vm74, %v71, 0.0
    %85 = vadd.xlane.f32.xlu0 %v84
    %v86 = vpop.xlane.xlu0 %85
    %v87 = vrcp.pop 32.0
    %v88 = vmul.f32 %v77, %v87
    %v89 = vmul.f32 %v80, %v87
    %v90 = vmul.f32 %v83, %v87
    %v91 = vmul.f32 %v86, %v87
    %v92 = vsub.f32 %v68, %v88
    %v93 = vsub.f32 %v69, %v89
    %v94 = vsub.f32 %v70, %v90
    %v95 = vsub.f32 %v71, %v91
    %v96 = vmul.f32 %v92, %v92
    %v97 = vmul.f32 %v93, %v93
    %v98 = vmul.f32 %v94, %v94
    %v99 = vmul.f32 %v95, %v95
    %v100 = vsel %vm74, %v96, 0.0
    %101 = vadd.xlane.f32.xlu0 %v100
    %v102 = vpop.xlane.xlu0 %101
    %v103 = vsel %vm74, %v97, 0.0
    %104 = vadd.xlane.f32.xlu0 %v103
    %v105 = vpop.xlane.xlu0 %104
    %v106 = vsel %vm74, %v98, 0.0
    %107 = vadd.xlane.f32.xlu0 %v106
    %v108 = vpop.xlane.xlu0 %107
    %v109 = vsel %vm74, %v99, 0.0
    %110 = vadd.xlane.f32.xlu0 %v109
    %v111 = vpop.xlane.xlu0 %110
    %v112 = vmul.f32 %v102, %v87
    %v113 = vmul.f32 %v105, %v87
    %v114 = vmul.f32 %v108, %v87
    %v115 = vmul.f32 %v111, %v87
    %v116 = vadd.f32 %v112, 1e-06
    %v117 = vadd.f32 %v113, 1e-06
    %v118 = vadd.f32 %v114, 1e-06
    %v119 = vadd.f32 %v115, 1e-06
    %v120 = vrsqrt.pop %v116
    %v121 = vrsqrt.pop %v117
    %v122 = vrsqrt.pop %v118
    %v123 = vrsqrt.pop %v119
    %v124 = vmul.f32 %v92, %v120
    %v125 = vmul.f32 %v93, %v121
    %v126 = vmul.f32 %v94, %v122
    %v127 = vmul.f32 %v95, %v123
    %v129 = vlaneseq
    %v130 = vshrl.u32 %v129, 7
    %v131 = vsub.s32 0, %v130
    %v132 = vrot.slane %v72, %v131
    %v134 = vmul.f32 %v124, %v132
    %v135 = vmul.f32 %v125, %v132
    %v136 = vmul.f32 %v126, %v132
    %v137 = vmul.f32 %v127, %v132
    %v139 = vlaneseq
    %v140 = vshrl.u32 %v139, 7
    %v141 = vsub.s32 0, %v140
    %v142 = vrot.slane %v73, %v141
    %v144 = vadd.f32 %v134, %v142
    %v145 = vadd.f32 %v135, %v142
    %v146 = vadd.f32 %v136, %v142
    %v147 = vadd.f32 %v137, %v142
    %148 = vst.msk [vmem:[#allocation8] sm:$0xff] %vm74, %v144
    %149 = vst.msk [vmem:[#allocation8 + $0x8] sm:$0xff] %vm74, %v145
    %150 = vst.msk [vmem:[#allocation8 + $0x10] sm:$0xff] %vm74, %v146
    %151 = vst.msk [vmem:[#allocation8 + $0x18] sm:$0xff] %vm74, %v147
    %v152 = vld [vmem:[#allocation5] sm:$0xff]
    %v153 = vld [vmem:[#allocation5 + $0x8] sm:$0xff]
    %v154 = vld [vmem:[#allocation5 + $0x10] sm:$0xff]
    %v155 = vld [vmem:[#allocation5 + $0x18] sm:$0xff]
    %v156 = vld [vmem:[#allocation5 + $0x20] sm:$0xff]
    %v157 = vld [vmem:[#allocation5 + $0x28] sm:$0xff]
    %v158 = vld [vmem:[#allocation5 + $0x30] sm:$0xff]
    %v159 = vld [vmem:[#allocation5 + $0x38] sm:$0xff]
    %v160 = vld [vmem:[#allocation5 + $0x40] sm:$0xff]
    %v161 = vld [vmem:[#allocation5 + $0x48] sm:$0xff]
    %v162 = vld [vmem:[#allocation5 + $0x50] sm:$0xff]
    %v163 = vld [vmem:[#allocation5 + $0x58] sm:$0xff]
    %v164 = vld [vmem:[%s4] sm:$0x7]
    %v166 = vlaneseq
    %v167 = vshrl.u32 %v166, 7
    %v168 = vsub.s32 0, %v167
    %v169 = vrot.slane %v164, %v168
    %v170 = vlaneseq
    %v171 = vshrl.u32 %v170, 7
    %v172 = vsub.s32 1, %v171
    %v173 = vrot.slane %v164, %v172
    %v174 = vlaneseq
    %v175 = vshrl.u32 %v174, 7
    %v176 = vsub.s32 2, %v175
    %v177 = vrot.slane %v164, %v176
    %v182 = vsel %vm74, %v144, 0
    %v185 = vsel %vm74, %v145, 0
    %v188 = vsel %vm74, %v146, 0
    %v191 = vsel %vm74, %v147, 0
    %193 = vmatprep.subr.mxu0 %v153
    %194 = vmatpush1.msra.mxu0 %v152
    %195 = vmatprep.subr.mxu0 %v156
    %196 = vmatpush1.msra.mxu0 %v155
    %197 = vmatprep.subr.mxu0 %v159
    %198 = vmatpush1.msra.mxu0 %v158
    %199 = vmatprep.subr.mxu0 %v162
    %200 = vmatpush1.msra.mxu0 %v161
    %201 = vmatprep.subr.mxu0 0.0
    %202 = vmatpush1.msra.mxu0 0.0
    %203 = vmatprep.subr.mxu0 0.0
    %204 = vmatpush1.msra.mxu0 0.0
    %205 = vmatprep.subr.mxu0 0.0
    %206 = vmatpush1.msra.mxu0 0.0
    %207 = vmatprep.subr.mxu0 0.0
    %208 = vmatpush1.msra.mxu0 0.0
    %209 = vmatprep.subr.mxu0 0.0
    %210 = vmatpush1.msra.mxu0 0.0
    %211 = vmatprep.subr.mxu0 0.0
    %212 = vmatpush1.msra.mxu0 0.0
    %213 = vmatprep.subr.mxu0 0.0
    %214 = vmatpush1.msra.mxu0 0.0
    %215 = vmatprep.subr.mxu0 0.0
    %216 = vmatpush1.msra.mxu0 0.0
    %217 = vmatprep.subr.mxu0 0.0
    %218 = vmatpush1.msra.mxu0 0.0
    %219 = vmatprep.subr.mxu0 0.0
    %220 = vmatpush1.msra.mxu0 0.0
    %221 = vmatprep.subr.mxu0 0.0
    %222 = vmatpush1.msra.mxu0 0.0
    %223 = vmatprep.subr.mxu0 0.0
    %224 = vmatpush1.msra.mxu0 0.0
    %225 = vmatprep.subr.mxu0 0.0
    %226 = vmatpush1.msra.mxu0 0.0
    %227 = vmatprep.subr.mxu0 0.0
    %228 = vmatpush1.msra.mxu0 0.0
    %229 = vmatprep.subr.mxu0 0.0
    %230 = vmatpush1.msra.mxu0 0.0
    %231 = vmatprep.subr.mxu0 0.0
    %232 = vmatpush1.msra.mxu0 0.0
    %233 = vmatprep.subr.mxu0 0.0
    %234 = vmatpush1.msra.mxu0 0.0
    %235 = vmatprep.subr.mxu0 0.0
    %236 = vmatpush1.msra.mxu0 0.0
    %237 = vmatprep.subr.mxu0 0.0
    %238 = vmatpush1.msra.mxu0 0.0
    %239 = vmatprep.subr.mxu0 0.0
    %240 = vmatpush1.msra.mxu0 0.0
    %241 = vmatprep.subr.mxu0 0.0
    %242 = vmatpush1.msra.mxu0 0.0
    %243 = vmatprep.subr.mxu0 0.0
    %244 = vmatpush1.msra.mxu0 0.0
    %245 = vmatprep.subr.mxu0 0.0
    %246 = vmatpush1.msra.mxu0 0.0
    %247 = vmatprep.subr.mxu0 0.0
    %248 = vmatpush1.msra.mxu0 0.0
    %249 = vmatprep.subr.mxu0 0.0
    %250 = vmatpush1.msra.mxu0 0.0
    %251 = vmatprep.subr.mxu0 0.0
    %252 = vmatpush1.msra.mxu0 0.0
    %253 = vmatprep.subr.mxu0 0.0
    %254 = vmatpush1.msra.mxu0 0.0
    %255 = vmatprep.subr.mxu0 0.0
    %256 = vmatpush1.msra.mxu0 0.0
    %257 = vmatprep.mubr.f32.mxu0 0.0
    %258 = vmatmul.mubr.f32.gmra.mrb[0].mxu0 %v182
    %v259 = vpop.f32.mrb[0].mxu0
    %v260 = vadd.f32 %v169, %v259
    %v261 = vpop.f32.mrb[0].mxu0
    %v262 = vadd.f32 %v173, %v261
    %263 = vmatprep.mubr.f32.mxu0 0.0
    %264 = vmatmul.mubr.f32.gmra.mrb[0].mxu0 %v185
    %v265 = vpop.f32.mrb[0].mxu0
    %v266 = vadd.f32 %v169, %v265
    %v267 = vpop.f32.mrb[0].mxu0
    %v268 = vadd.f32 %v173, %v267
    %269 = vmatprep.mubr.f32.mxu0 0.0
    %270 = vmatmul.mubr.f32.gmra.mrb[0].mxu0 %v188
    %v271 = vpop.f32.mrb[0].mxu0
    %v272 = vadd.f32 %v169, %v271
    %v273 = vpop.f32.mrb[0].mxu0
    %v274 = vadd.f32 %v173, %v273
    %275 = vmatprep.mubr.f32.mxu0 0.0
    %276 = vmatmul.mubr.f32.gmra.mrb[0].mxu0 %v191
    %v277 = vpop.f32.mrb[0].mxu0
    %v278 = vadd.f32 %v169, %v277
    %v279 = vpop.f32.mrb[0].mxu0
    %v280 = vadd.f32 %v173, %v279
    %281 = vdwg.mxu0
    %282 = vmatprep.subr.mxu0 0.0
    %283 = vmatpush1.msra.mxu0 %v154
    %284 = vmatprep.subr.mxu0 0.0
    %285 = vmatpush1.msra.mxu0 %v157
    %286 = vmatprep.subr.mxu0 0.0
    %287 = vmatpush1.msra.mxu0 %v160
    %288 = vmatprep.subr.mxu0 0.0
    %289 = vmatpush1.msra.mxu0 %v163
    %290 = vmatprep.subr.mxu0 0.0
    %291 = vmatpush1.msra.mxu0 0.0
    %292 = vmatprep.subr.mxu0 0.0
    %293 = vmatpush1.msra.mxu0 0.0
    %294 = vmatprep.subr.mxu0 0.0
    %295 = vmatpush1.msra.mxu0 0.0
    %296 = vmatprep.subr.mxu0 0.0
    %297 = vmatpush1.msra.mxu0 0.0
    %298 = vmatprep.subr.mxu0 0.0
    %299 = vmatpush1.msra.mxu0 0.0
    %300 = vmatprep.subr.mxu0 0.0
    %301 = vmatpush1.msra.mxu0 0.0
    %302 = vmatprep.subr.mxu0 0.0
    %303 = vmatpush1.msra.mxu0 0.0
    %304 = vmatprep.subr.mxu0 0.0
    %305 = vmatpush1.msra.mxu0 0.0
    %306 = vmatprep.subr.mxu0 0.0
    %307 = vmatpush1.msra.mxu0 0.0
    %308 = vmatprep.subr.mxu0 0.0
    %309 = vmatpush1.msra.mxu0 0.0
    %310 = vmatprep.subr.mxu0 0.0
    %311 = vmatpush1.msra.mxu0 0.0
    %312 = vmatprep.subr.mxu0 0.0
    %313 = vmatpush1.msra.mxu0 0.0
    %314 = vmatprep.subr.mxu0 0.0
    %315 = vmatpush1.msra.mxu0 0.0
    %316 = vmatprep.subr.mxu0 0.0
    %317 = vmatpush1.msra.mxu0 0.0
    %318 = vmatprep.subr.mxu0 0.0
    %319 = vmatpush1.msra.mxu0 0.0
    %320 = vmatprep.subr.mxu0 0.0
    %321 = vmatpush1.msra.mxu0 0.0
    %322 = vmatprep.subr.mxu0 0.0
    %323 = vmatpush1.msra.mxu0 0.0
    %324 = vmatprep.subr.mxu0 0.0
    %325 = vmatpush1.msra.mxu0 0.0
    %326 = vmatprep.subr.mxu0 0.0
    %327 = vmatpush1.msra.mxu0 0.0
    %328 = vmatprep.subr.mxu0 0.0
    %329 = vmatpush1.msra.mxu0 0.0
    %330 = vmatprep.subr.mxu0 0.0
    %331 = vmatpush1.msra.mxu0 0.0
    %332 = vmatprep.subr.mxu0 0.0
    %333 = vmatpush1.msra.mxu0 0.0
    %334 = vmatprep.subr.mxu0 0.0
    %335 = vmatpush1.msra.mxu0 0.0
    %336 = vmatprep.subr.mxu0 0.0
    %337 = vmatpush1.msra.mxu0 0.0
    %338 = vmatprep.subr.mxu0 0.0
    %339 = vmatpush1.msra.mxu0 0.0
    %340 = vmatprep.subr.mxu0 0.0
    %341 = vmatpush1.msra.mxu0 0.0
    %342 = vmatprep.subr.mxu0 0.0
    %343 = vmatpush1.msra.mxu0 0.0
    %344 = vmatprep.subr.mxu0 0.0
    %345 = vmatpush1.msra.mxu0 0.0
    %346 = vmatprep.mubr.f32.mxu0 0.0
    %347 = vmatmul.mubr.f32.gmra.mrb[0].mxu0 %v182
    %v348 = vpop.f32.mrb[0].mxu0
    %v349 = vadd.f32 %v177, %v348
    %v350 = vpop.f32.mrb[0].mxu0
    %351 = vmatprep.mubr.f32.mxu0 0.0
    %352 = vmatmul.mubr.f32.gmra.mrb[0].mxu0 %v185
    %v353 = vpop.f32.mrb[0].mxu0
    %v354 = vadd.f32 %v177, %v353
    %v355 = vpop.f32.mrb[0].mxu0
    %356 = vmatprep.mubr.f32.mxu0 0.0
    %357 = vmatmul.mubr.f32.gmra.mrb[0].mxu0 %v188
    %v358 = vpop.f32.mrb[0].mxu0
    %v359 = vadd.f32 %v177, %v358
    %v360 = vpop.f32.mrb[0].mxu0
    %361 = vmatprep.mubr.f32.mxu0 0.0
    %362 = vmatmul.mubr.f32.gmra.mrb[0].mxu0 %v191
    %v363 = vpop.f32.mrb[0].mxu0
    %v364 = vadd.f32 %v177, %v363
    %v365 = vpop.f32.mrb[0].mxu0
    %366 = vdwg.mxu0
    %v367 = vlaneseq
    %v368 = vand.u32 %v367, 127
    %v369 = vadd.s32 %v368, 128
    %v370 = vadd.s32 %v368, 256
    %vm371 = vcmp.ge.s32.totalorder %v368, 256
    %vm372 = vcmp.ge.s32.totalorder %v369, 256
    %vm373 = vcmp.ge.s32.totalorder %v370, 256
    %v374 = vsel %vm371, %v260, -inf
    %v375 = vsel %vm372, %v262, -inf
    %v376 = vsel %vm373, %v349, -inf
    %v377 = vsel %vm371, %v266, -inf
    %v378 = vsel %vm372, %v268, -inf
    %v379 = vsel %vm373, %v354, -inf
    %v380 = vsel %vm371, %v272, -inf
    %v381 = vsel %vm372, %v274, -inf
    %v382 = vsel %vm373, %v359, -inf
    %v383 = vsel %vm371, %v278, -inf
    %v384 = vsel %vm372, %v280, -inf
    %v385 = vsel %vm373, %v364, -inf
    %v386 = vmax.f32 %v374, %v375
    %v387 = vmax.f32 %v386, %v376
    %388 = vmax.xlane.f32.xlu0 %v387
    %v389 = vpop.xlane.xlu0 %388
    %v390 = vmax.f32 %v377, %v378
    %v391 = vmax.f32 %v390, %v379
    %392 = vmax.xlane.f32.xlu0 %v391
    %v393 = vpop.xlane.xlu0 %392
    %v394 = vmax.f32 %v380, %v381
    %v395 = vmax.f32 %v394, %v382
    %396 = vmax.xlane.f32.xlu0 %v395
    %v397 = vpop.xlane.xlu0 %396
    %v398 = vmax.f32 %v383, %v384
    %v399 = vmax.f32 %v398, %v385
    %400 = vmax.xlane.f32.xlu0 %v399
    %v401 = vpop.xlane.xlu0 %400
    %v402 = vsub.f32 %v260, %v389
    %v403 = vsub.f32 %v262, %v389
    %v404 = vsub.f32 %v349, %v389
    %v405 = vsub.f32 %v266, %v393
    %v406 = vsub.f32 %v268, %v393
    %v407 = vsub.f32 %v354, %v393
    %v408 = vsub.f32 %v272, %v397
    %v409 = vsub.f32 %v274, %v397
    %v410 = vsub.f32 %v359, %v397
    %v411 = vsub.f32 %v278, %v401
    %v412 = vsub.f32 %v280, %v401
    %v413 = vsub.f32 %v364, %v401
    %v414 = vsel %vm371, %v402, -inf
    %v415 = vsel %vm372, %v403, -inf
    %v416 = vsel %vm373, %v404, -inf
    %v417 = vsel %vm371, %v405, -inf
    %v418 = vsel %vm372, %v406, -inf
    %v419 = vsel %vm373, %v407, -inf
    %v420 = vsel %vm371, %v408, -inf
    %v421 = vsel %vm372, %v409, -inf
    %v422 = vsel %vm373, %v410, -inf
    %v423 = vsel %vm371, %v411, -inf
    %v424 = vsel %vm372, %v412, -inf
    %v425 = vsel %vm373, %v413, -inf
    %v426 = vmul.f32 %v414, 1.442695
    %v427 = vpow.pop %v426
    %v428 = vmul.f32 %v415, 1.442695
    %v429 = vpow.pop %v428
    %v430 = vmul.f32 %v416, 1.442695
    %v431 = vpow.pop %v430
    %v432 = vmul.f32 %v417, 1.442695
    %v433 = vpow.pop %v432
    %v434 = vmul.f32 %v418, 1.442695
    %v435 = vpow.pop %v434
    %v436 = vmul.f32 %v419, 1.442695
    %v437 = vpow.pop %v436
    %v438 = vmul.f32 %v420, 1.442695
    %v439 = vpow.pop %v438
    %v440 = vmul.f32 %v421, 1.442695
    %v441 = vpow.pop %v440
    %v442 = vmul.f32 %v422, 1.442695
    %v443 = vpow.pop %v442
    %v444 = vmul.f32 %v423, 1.442695
    %v445 = vpow.pop %v444
    %v446 = vmul.f32 %v424, 1.442695
    %v447 = vpow.pop %v446
    %v448 = vmul.f32 %v425, 1.442695
    %v449 = vpow.pop %v448
    %v450 = vld [vmem:[#allocation7] sm:$0xff]
    %v451 = vld [vmem:[#allocation7 + $0x8] sm:$0xff]
    %v452 = vld [vmem:[#allocation7 + $0x10] sm:$0xff]
    %v453 = vld [vmem:[#allocation7 + $0x18] sm:$0xff]
    %v454 = vld [vmem:[#allocation7 + $0x20] sm:$0xff]
    %v455 = vld [vmem:[#allocation7 + $0x28] sm:$0xff]
    %v456 = vld [vmem:[#allocation7 + $0x30] sm:$0xff]
    %v457 = vld [vmem:[#allocation7 + $0x38] sm:$0xff]
    %v458 = vld [vmem:[#allocation7 + $0x40] sm:$0xff]
    %v459 = vld [vmem:[#allocation7 + $0x48] sm:$0xff]
    %v460 = vld [vmem:[#allocation7 + $0x50] sm:$0xff]
    %v461 = vld [vmem:[#allocation7 + $0x58] sm:$0xff]
    %v462 = vld [vmem:[#allocation7 + $0x60] sm:$0xff]
    %v463 = vld [vmem:[#allocation7 + $0x68] sm:$0xff]
    %v464 = vld [vmem:[#allocation7 + $0x70] sm:$0xff]
    %v465 = vld [vmem:[#allocation7 + $0x78] sm:$0xff]
    %v466 = vld [vmem:[#allocation7 + $0x80] sm:$0xff]
    %v467 = vld [vmem:[#allocation7 + $0x88] sm:$0xff]
    %v468 = vld [vmem:[#allocation7 + $0x90] sm:$0xff]
    %v469 = vld [vmem:[#allocation7 + $0x98] sm:$0xff]
    %v470 = vld [vmem:[#allocation7 + $0xa0] sm:$0xff]
    %v471 = vld [vmem:[#allocation7 + $0xa8] sm:$0xff]
    %v472 = vld [vmem:[#allocation7 + $0xb0] sm:$0xff]
    %v473 = vld [vmem:[#allocation7 + $0xb8] sm:$0xff]
    %v474 = vld [vmem:[#allocation7 + $0xc0] sm:$0xff]
    %v475 = vld [vmem:[#allocation7 + $0xc8] sm:$0xff]
    %v476 = vld [vmem:[#allocation7 + $0xd0] sm:$0xff]
    %v477 = vld [vmem:[#allocation7 + $0xd8] sm:$0xff]
    %v478 = vld [vmem:[#allocation7 + $0xe0] sm:$0xff]
    %v479 = vld [vmem:[#allocation7 + $0xe8] sm:$0xff]
    %v480 = vld [vmem:[#allocation7 + $0xf0] sm:$0xff]
    %v481 = vld [vmem:[#allocation7 + $0xf8] sm:$0xff]
    %v482 = vld [vmem:[#allocation7 + $0x100] sm:$0xff]
    %v483 = vld [vmem:[#allocation7 + $0x108] sm:$0xff]
    %v484 = vld [vmem:[#allocation7 + $0x110] sm:$0xff]
    %v485 = vld [vmem:[#allocation7 + $0x118] sm:$0xff]
    %v486 = vld [vmem:[#allocation7 + $0x120] sm:$0xff]
    %v487 = vld [vmem:[#allocation7 + $0x128] sm:$0xff]
    %v488 = vld [vmem:[#allocation7 + $0x130] sm:$0xff]
    %v489 = vld [vmem:[#allocation7 + $0x138] sm:$0xff]
    %v490 = vld [vmem:[#allocation7 + $0x140] sm:$0xff]
    %v491 = vld [vmem:[#allocation7 + $0x148] sm:$0xff]
    %v492 = vld [vmem:[#allocation7 + $0x150] sm:$0xff]
    %v493 = vld [vmem:[#allocation7 + $0x158] sm:$0xff]
    %v494 = vld [vmem:[#allocation7 + $0x160] sm:$0xff]
    %v495 = vld [vmem:[#allocation7 + $0x168] sm:$0xff]
    %v496 = vld [vmem:[#allocation7 + $0x170] sm:$0xff]
    %v497 = vld [vmem:[#allocation7 + $0x178] sm:$0xff]
    %v498 = vld [vmem:[#allocation7 + $0x180] sm:$0xff]
    %v499 = vld [vmem:[#allocation7 + $0x188] sm:$0xff]
    %v500 = vld [vmem:[#allocation7 + $0x190] sm:$0xff]
    %v501 = vld [vmem:[#allocation7 + $0x198] sm:$0xff]
    %v502 = vld [vmem:[#allocation7 + $0x1a0] sm:$0xff]
    %v503 = vld [vmem:[#allocation7 + $0x1a8] sm:$0xff]
    %v504 = vld [vmem:[#allocation7 + $0x1b0] sm:$0xff]
    %v505 = vld [vmem:[#allocation7 + $0x1b8] sm:$0xff]
    %v506 = vld [vmem:[#allocation7 + $0x1c0] sm:$0xff]
    %v507 = vld [vmem:[#allocation7 + $0x1c8] sm:$0xff]
    %v508 = vld [vmem:[#allocation7 + $0x1d0] sm:$0xff]
    %v509 = vld [vmem:[#allocation7 + $0x1d8] sm:$0xff]
    %v510 = vld [vmem:[#allocation7 + $0x1e0] sm:$0xff]
    %v511 = vld [vmem:[#allocation7 + $0x1e8] sm:$0xff]
    %v512 = vld [vmem:[#allocation7 + $0x1f0] sm:$0xff]
    %v513 = vld [vmem:[#allocation7 + $0x1f8] sm:$0xff]
    %v514 = vld [vmem:[#allocation7 + $0x200] sm:$0xff]
    %v515 = vld [vmem:[#allocation7 + $0x208] sm:$0xff]
    %v516 = vld [vmem:[#allocation7 + $0x210] sm:$0xff]
    %v517 = vld [vmem:[#allocation7 + $0x218] sm:$0xff]
    %v518 = vld [vmem:[#allocation7 + $0x220] sm:$0xff]
    %v519 = vld [vmem:[#allocation7 + $0x228] sm:$0xff]
    %v520 = vld [vmem:[#allocation7 + $0x230] sm:$0xff]
    %v521 = vld [vmem:[#allocation7 + $0x238] sm:$0xff]
    %v522 = vld [vmem:[#allocation7 + $0x240] sm:$0xff]
    %v523 = vld [vmem:[#allocation7 + $0x248] sm:$0xff]
    %v524 = vld [vmem:[#allocation7 + $0x250] sm:$0xff]
    %v525 = vld [vmem:[#allocation7 + $0x258] sm:$0xff]
    %v526 = vld [vmem:[#allocation7 + $0x260] sm:$0xff]
    %v527 = vld [vmem:[#allocation7 + $0x268] sm:$0xff]
    %v528 = vld [vmem:[#allocation7 + $0x270] sm:$0xff]
    %v529 = vld [vmem:[#allocation7 + $0x278] sm:$0xff]
    %v530 = vld [vmem:[#allocation7 + $0x280] sm:$0xff]
    %v531 = vld [vmem:[#allocation7 + $0x288] sm:$0xff]
    %v532 = vld [vmem:[#allocation7 + $0x290] sm:$0xff]
    %v533 = vld [vmem:[#allocation7 + $0x298] sm:$0xff]
    %v534 = vld [vmem:[#allocation7 + $0x2a0] sm:$0xff]
    %v535 = vld [vmem:[#allocation7 + $0x2a8] sm:$0xff]
    %v536 = vld [vmem:[#allocation7 + $0x2b0] sm:$0xff]
    %v537 = vld [vmem:[#allocation7 + $0x2b8] sm:$0xff]
    %v538 = vld [vmem:[#allocation7 + $0x2c0] sm:$0xff]
    %v539 = vld [vmem:[#allocation7 + $0x2c8] sm:$0xff]
    %v540 = vld [vmem:[#allocation7 + $0x2d0] sm:$0xff]
    %v541 = vld [vmem:[#allocation7 + $0x2d8] sm:$0xff]
    %v542 = vld [vmem:[#allocation7 + $0x2e0] sm:$0xff]
    %v543 = vld [vmem:[#allocation7 + $0x2e8] sm:$0xff]
    %v544 = vld [vmem:[#allocation7 + $0x2f0] sm:$0xff]
    %v545 = vld [vmem:[#allocation7 + $0x2f8] sm:$0xff]
    %v546 = vld [vmem:[#allocation7 + $0x300] sm:$0xff]
    %v547 = vld [vmem:[#allocation7 + $0x308] sm:$0xff]
    %v548 = vld [vmem:[#allocation7 + $0x310] sm:$0xff]
    %v549 = vld [vmem:[#allocation7 + $0x318] sm:$0xff]
    %v550 = vld [vmem:[#allocation7 + $0x320] sm:$0xff]
    %v551 = vld [vmem:[#allocation7 + $0x328] sm:$0xff]
    %v552 = vld [vmem:[#allocation7 + $0x330] sm:$0xff]
    %v553 = vld [vmem:[#allocation7 + $0x338] sm:$0xff]
    %v554 = vld [vmem:[#allocation7 + $0x340] sm:$0xff]
    %v555 = vld [vmem:[#allocation7 + $0x348] sm:$0xff]
    %v556 = vld [vmem:[#allocation7 + $0x350] sm:$0xff]
    %v557 = vld [vmem:[#allocation7 + $0x358] sm:$0xff]
    %v558 = vld [vmem:[#allocation7 + $0x360] sm:$0xff]
    %v559 = vld [vmem:[#allocation7 + $0x368] sm:$0xff]
    %v560 = vld [vmem:[#allocation7 + $0x370] sm:$0xff]
    %v561 = vld [vmem:[#allocation7 + $0x378] sm:$0xff]
    %v562 = vld [vmem:[#allocation7 + $0x380] sm:$0xff]
    %v563 = vld [vmem:[#allocation7 + $0x388] sm:$0xff]
    %v564 = vld [vmem:[#allocation7 + $0x390] sm:$0xff]
    %v565 = vld [vmem:[#allocation7 + $0x398] sm:$0xff]
    %v566 = vld [vmem:[#allocation7 + $0x3a0] sm:$0xff]
    %v567 = vld [vmem:[#allocation7 + $0x3a8] sm:$0xff]
    %v568 = vld [vmem:[#allocation7 + $0x3b0] sm:$0xff]
    %v569 = vld [vmem:[#allocation7 + $0x3b8] sm:$0xff]
    %v570 = vld [vmem:[#allocation7 + $0x3c0] sm:$0xff]
    %v571 = vld [vmem:[#allocation7 + $0x3c8] sm:$0xff]
    %v572 = vld [vmem:[#allocation7 + $0x3d0] sm:$0xff]
    %v573 = vld [vmem:[#allocation7 + $0x3d8] sm:$0xff]
    %v574 = vld [vmem:[#allocation7 + $0x3e0] sm:$0xff]
    %v575 = vld [vmem:[#allocation7 + $0x3e8] sm:$0xff]
    %v576 = vld [vmem:[#allocation7 + $0x3f0] sm:$0xff]
    %v577 = vld [vmem:[#allocation7 + $0x3f8] sm:$0xff]
    %v578 = vld [vmem:[#allocation7 + $0x400] sm:$0xff]
    %v579 = vld [vmem:[#allocation7 + $0x408] sm:$0xff]
    %v580 = vld [vmem:[#allocation7 + $0x410] sm:$0xff]
    %v581 = vld [vmem:[#allocation7 + $0x418] sm:$0xff]
    %v582 = vld [vmem:[#allocation7 + $0x420] sm:$0xff]
    %v583 = vld [vmem:[#allocation7 + $0x428] sm:$0xff]
    %v584 = vld [vmem:[#allocation7 + $0x430] sm:$0xff]
    %v585 = vld [vmem:[#allocation7 + $0x438] sm:$0xff]
    %v586 = vld [vmem:[#allocation7 + $0x440] sm:$0xff]
    %v587 = vld [vmem:[#allocation7 + $0x448] sm:$0xff]
    %v588 = vld [vmem:[#allocation7 + $0x450] sm:$0xff]
    %v589 = vld [vmem:[#allocation7 + $0x458] sm:$0xff]
    %v590 = vld [vmem:[#allocation7 + $0x460] sm:$0xff]
    %v591 = vld [vmem:[#allocation7 + $0x468] sm:$0xff]
    %v592 = vld [vmem:[#allocation7 + $0x470] sm:$0xff]
    %v593 = vld [vmem:[#allocation7 + $0x478] sm:$0xff]
    %594 = vmatprep.subr.mxu0 %v451
    %595 = vmatpush1.msra.mxu0 %v450
    %596 = vmatprep.subr.mxu0 %v454
    %597 = vmatpush1.msra.mxu0 %v453
    %598 = vmatprep.subr.mxu0 %v457
    %599 = vmatpush1.msra.mxu0 %v456
    %600 = vmatprep.subr.mxu0 %v460
    %601 = vmatpush1.msra.mxu0 %v459
    %602 = vmatprep.subr.mxu0 %v463
    %603 = vmatpush1.msra.mxu0 %v462
    %604 = vmatprep.subr.mxu0 %v466
    %605 = vmatpush1.msra.mxu0 %v465
    %606 = vmatprep.subr.mxu0 %v469
    %607 = vmatpush1.msra.mxu0 %v468
    %608 = vmatprep.subr.mxu0 %v472
    %609 = vmatpush1.msra.mxu0 %v471
    %610 = vmatprep.subr.mxu0 %v475
    %611 = vmatpush1.msra.mxu0 %v474
    %612 = vmatprep.subr.mxu0 %v478
    %613 = vmatpush1.msra.mxu0 %v477
    %614 = vmatprep.subr.mxu0 %v481
    %615 = vmatpush1.msra.mxu0 %v480
    %616 = vmatprep.subr.mxu0 %v484
    %617 = vmatpush1.msra.mxu0 %v483
    %618 = vmatprep.subr.mxu0 %v487
    %619 = vmatpush1.msra.mxu0 %v486
    %620 = vmatprep.subr.mxu0 %v490
    %621 = vmatpush1.msra.mxu0 %v489
    %622 = vmatprep.subr.mxu0 %v493
    %623 = vmatpush1.msra.mxu0 %v492
    %624 = vmatprep.subr.mxu0 %v496
    %625 = vmatpush1.msra.mxu0 %v495
    %626 = vmatprep.subr.mxu0 %v499
    %627 = vmatpush1.msra.mxu0 %v498
    %628 = vmatprep.subr.mxu0 %v502
    %629 = vmatpush1.msra.mxu0 %v501
    %630 = vmatprep.subr.mxu0 %v505
    %631 = vmatpush1.msra.mxu0 %v504
    %632 = vmatprep.subr.mxu0 %v508
    %633 = vmatpush1.msra.mxu0 %v507
    %634 = vmatprep.subr.mxu0 %v511
    %635 = vmatpush1.msra.mxu0 %v510
    %636 = vmatprep.subr.mxu0 %v514
    %637 = vmatpush1.msra.mxu0 %v513
    %638 = vmatprep.subr.mxu0 %v517
    %639 = vmatpush1.msra.mxu0 %v516
    %640 = vmatprep.subr.mxu0 %v520
    %641 = vmatpush1.msra.mxu0 %v519
    %642 = vmatprep.subr.mxu0 %v523
    %643 = vmatpush1.msra.mxu0 %v522
    %644 = vmatprep.subr.mxu0 %v526
    %645 = vmatpush1.msra.mxu0 %v525
    %646 = vmatprep.subr.mxu0 %v529
    %647 = vmatpush1.msra.mxu0 %v528
    %648 = vmatprep.subr.mxu0 %v532
    %649 = vmatpush1.msra.mxu0 %v531
    %650 = vmatprep.subr.mxu0 %v535
    %651 = vmatpush1.msra.mxu0 %v534
    %652 = vmatprep.subr.mxu0 %v538
    %653 = vmatpush1.msra.mxu0 %v537
    %654 = vmatprep.subr.mxu0 %v541
    %655 = vmatpush1.msra.mxu0 %v540
    %656 = vmatprep.subr.mxu0 %v544
    %657 = vmatpush1.msra.mxu0 %v543
    %658 = vmatprep.mubr.f32.mxu0 %v429
    %659 = vmatmul.mubr.f32.gmra.mrb[0].mxu0 %v427
    %v660 = vpop.f32.mrb[0].mxu0
    %v661 = vadd.f32 0.0, %v660
    %v662 = vpop.f32.mrb[0].mxu0
    %v663 = vadd.f32 0.0, %v662
    %664 = vmatprep.mubr.f32.mxu0 %v435
    %665 = vmatmul.mubr.f32.gmra.mrb[0].mxu0 %v433
    %v666 = vpop.f32.mrb[0].mxu0
    %v667 = vadd.f32 0.0, %v666
    %v668 = vpop.f32.mrb[0].mxu0
    %v669 = vadd.f32 0.0, %v668
    %670 = vmatprep.mubr.f32.mxu0 %v441
    %671 = vmatmul.mubr.f32.gmra.mrb[0].mxu0 %v439
    %v672 = vpop.f32.mrb[0].mxu0
    %v673 = vadd.f32 0.0, %v672
    %v674 = vpop.f32.mrb[0].mxu0
    %v675 = vadd.f32 0.0, %v674
    %676 = vmatprep.mubr.f32.mxu0 %v447
    %677 = vmatmul.mubr.f32.gmra.mrb[0].mxu0 %v445
    %v678 = vpop.f32.mrb[0].mxu0
    %v679 = vadd.f32 0.0, %v678
    %v680 = vpop.f32.mrb[0].mxu0
    %v681 = vadd.f32 0.0, %v680
    %682 = vdwg.mxu0
    %683 = vmatprep.subr.mxu0 %v547
    %684 = vmatpush1.msra.mxu0 %v546
    %685 = vmatprep.subr.mxu0 %v550
    %686 = vmatpush1.msra.mxu0 %v549
    %687 = vmatprep.subr.mxu0 %v553
    %688 = vmatpush1.msra.mxu0 %v552
    %689 = vmatprep.subr.mxu0 %v556
    %690 = vmatpush1.msra.mxu0 %v555
    %691 = vmatprep.subr.mxu0 %v559
    %692 = vmatpush1.msra.mxu0 %v558
    %693 = vmatprep.subr.mxu0 %v562
    %694 = vmatpush1.msra.mxu0 %v561
    %695 = vmatprep.subr.mxu0 %v565
    %696 = vmatpush1.msra.mxu0 %v564
    %697 = vmatprep.subr.mxu0 %v568
    %698 = vmatpush1.msra.mxu0 %v567
    %699 = vmatprep.subr.mxu0 %v571
    %700 = vmatpush1.msra.mxu0 %v570
    %701 = vmatprep.subr.mxu0 %v574
    %702 = vmatpush1.msra.mxu0 %v573
    %703 = vmatprep.subr.mxu0 %v577
    %704 = vmatpush1.msra.mxu0 %v576
    %705 = vmatprep.subr.mxu0 %v580
    %706 = vmatpush1.msra.mxu0 %v579
    %707 = vmatprep.subr.mxu0 %v583
    %708 = vmatpush1.msra.mxu0 %v582
    %709 = vmatprep.subr.mxu0 %v586
    %710 = vmatpush1.msra.mxu0 %v585
    %711 = vmatprep.subr.mxu0 %v589
    %712 = vmatpush1.msra.mxu0 %v588
    %713 = vmatprep.subr.mxu0 %v592
    %714 = vmatpush1.msra.mxu0 %v591
    %715 = vmatprep.subr.mxu0 0.0
    %716 = vmatpush1.msra.mxu0 0.0
    %717 = vmatprep.subr.mxu0 0.0
    %718 = vmatpush1.msra.mxu0 0.0
    %719 = vmatprep.subr.mxu0 0.0
    %720 = vmatpush1.msra.mxu0 0.0
    %721 = vmatprep.subr.mxu0 0.0
    %722 = vmatpush1.msra.mxu0 0.0
    %723 = vmatprep.subr.mxu0 0.0
    %724 = vmatpush1.msra.mxu0 0.0
    %725 = vmatprep.subr.mxu0 0.0
    %726 = vmatpush1.msra.mxu0 0.0
    %727 = vmatprep.subr.mxu0 0.0
    %728 = vmatpush1.msra.mxu0 0.0
    %729 = vmatprep.subr.mxu0 0.0
    %730 = vmatpush1.msra.mxu0 0.0
    %731 = vmatprep.subr.mxu0 0.0
    %732 = vmatpush1.msra.mxu0 0.0
    %733 = vmatprep.subr.mxu0 0.0
    %734 = vmatpush1.msra.mxu0 0.0
    %735 = vmatprep.subr.mxu0 0.0
    %736 = vmatpush1.msra.mxu0 0.0
    %737 = vmatprep.subr.mxu0 0.0
    %738 = vmatpush1.msra.mxu0 0.0
    %739 = vmatprep.subr.mxu0 0.0
    %740 = vmatpush1.msra.mxu0 0.0
    %741 = vmatprep.subr.mxu0 0.0
    %742 = vmatpush1.msra.mxu0 0.0
    %743 = vmatprep.subr.mxu0 0.0
    %744 = vmatpush1.msra.mxu0 0.0
    %745 = vmatprep.subr.mxu0 0.0
    %746 = vmatpush1.msra.mxu0 0.0
    %747 = vmatprep.mubr.f32.mxu0 0.0
    %748 = vmatmul.mubr.f32.gmra.mrb[0].mxu0 %v431
    %v749 = vpop.f32.mrb[0].mxu0
    %v750 = vadd.f32 %v661, %v749
    %v751 = vpop.f32.mrb[0].mxu0
    %v752 = vadd.f32 %v663, %v751
    %753 = vmatprep.mubr.f32.mxu0 0.0
    %754 = vmatmul.mubr.f32.gmra.mrb[0].mxu0 %v437
    %v755 = vpop.f32.mrb[0].mxu0
    %v756 = vadd.f32 %v667, %v755
    %v757 = vpop.f32.mrb[0].mxu0
    %v758 = vadd.f32 %v669, %v757
    %759 = vmatprep.mubr.f32.mxu0 0.0
    %760 = vmatmul.mubr.f32.gmra.mrb[0].mxu0 %v443
    %v761 = vpop.f32.mrb[0].mxu0
    %v762 = vadd.f32 %v673, %v761
    %v763 = vpop.f32.mrb[0].mxu0
    %v764 = vadd.f32 %v675, %v763
    %765 = vmatprep.mubr.f32.mxu0 0.0
    %766 = vmatmul.mubr.f32.gmra.mrb[0].mxu0 %v449
    %v767 = vpop.f32.mrb[0].mxu0
    %v768 = vadd.f32 %v679, %v767
    %v769 = vpop.f32.mrb[0].mxu0
    %v770 = vadd.f32 %v681, %v769
    %771 = vdwg.mxu0
    %772 = vmatprep.subr.mxu0 0.0
    %773 = vmatpush1.msra.mxu0 %v452
    %774 = vmatprep.subr.mxu0 0.0
    %775 = vmatpush1.msra.mxu0 %v455
    %776 = vmatprep.subr.mxu0 0.0
    %777 = vmatpush1.msra.mxu0 %v458
    %778 = vmatprep.subr.mxu0 0.0
    %779 = vmatpush1.msra.mxu0 %v461
    %780 = vmatprep.subr.mxu0 0.0
    %781 = vmatpush1.msra.mxu0 %v464
    %782 = vmatprep.subr.mxu0 0.0
    %783 = vmatpush1.msra.mxu0 %v467
    %784 = vmatprep.subr.mxu0 0.0
    %785 = vmatpush1.msra.mxu0 %v470
    %786 = vmatprep.subr.mxu0 0.0
    %787 = vmatpush1.msra.mxu0 %v473
    %788 = vmatprep.subr.mxu0 0.0
    %789 = vmatpush1.msra.mxu0 %v476
    %790 = vmatprep.subr.mxu0 0.0
    %791 = vmatpush1.msra.mxu0 %v479
    %792 = vmatprep.subr.mxu0 0.0
    %793 = vmatpush1.msra.mxu0 %v482
    %794 = vmatprep.subr.mxu0 0.0
    %795 = vmatpush1.msra.mxu0 %v485
    %796 = vmatprep.subr.mxu0 0.0
    %797 = vmatpush1.msra.mxu0 %v488
    %798 = vmatprep.subr.mxu0 0.0
    %799 = vmatpush1.msra.mxu0 %v491
    %800 = vmatprep.subr.mxu0 0.0
    %801 = vmatpush1.msra.mxu0 %v494
    %802 = vmatprep.subr.mxu0 0.0
    %803 = vmatpush1.msra.mxu0 %v497
    %804 = vmatprep.subr.mxu0 0.0
    %805 = vmatpush1.msra.mxu0 %v500
    %806 = vmatprep.subr.mxu0 0.0
    %807 = vmatpush1.msra.mxu0 %v503
    %808 = vmatprep.subr.mxu0 0.0
    %809 = vmatpush1.msra.mxu0 %v506
    %810 = vmatprep.subr.mxu0 0.0
    %811 = vmatpush1.msra.mxu0 %v509
    %812 = vmatprep.subr.mxu0 0.0
    %813 = vmatpush1.msra.mxu0 %v512
    %814 = vmatprep.subr.mxu0 0.0
    %815 = vmatpush1.msra.mxu0 %v515
    %816 = vmatprep.subr.mxu0 0.0
    %817 = vmatpush1.msra.mxu0 %v518
    %818 = vmatprep.subr.mxu0 0.0
    %819 = vmatpush1.msra.mxu0 %v521
    %820 = vmatprep.subr.mxu0 0.0
    %821 = vmatpush1.msra.mxu0 %v524
    %822 = vmatprep.subr.mxu0 0.0
    %823 = vmatpush1.msra.mxu0 %v527
    %824 = vmatprep.subr.mxu0 0.0
    %825 = vmatpush1.msra.mxu0 %v530
    %826 = vmatprep.subr.mxu0 0.0
    %827 = vmatpush1.msra.mxu0 %v533
    %828 = vmatprep.subr.mxu0 0.0
    %829 = vmatpush1.msra.mxu0 %v536
    %830 = vmatprep.subr.mxu0 0.0
    %831 = vmatpush1.msra.mxu0 %v539
    %832 = vmatprep.subr.mxu0 0.0
    %833 = vmatpush1.msra.mxu0 %v542
    %834 = vmatprep.subr.mxu0 0.0
    %835 = vmatpush1.msra.mxu0 %v545
    %836 = vmatprep.mubr.f32.mxu0 %v429
    %837 = vmatmul.mubr.f32.gmra.mrb[0].mxu0 %v427
    %v838 = vpop.f32.mrb[0].mxu0
    %v839 = vadd.f32 0.0, %v838
    %v840 = vpop.f32.mrb[0].mxu0
    %841 = vmatprep.mubr.f32.mxu0 %v435
    %842 = vmatmul.mubr.f32.gmra.mrb[0].mxu0 %v433
    %v843 = vpop.f32.mrb[0].mxu0
    %v844 = vadd.f32 0.0, %v843
    %v845 = vpop.f32.mrb[0].mxu0
    %846 = vmatprep.mubr.f32.mxu0 %v441
    %847 = vmatmul.mubr.f32.gmra.mrb[0].mxu0 %v439
    %v848 = vpop.f32.mrb[0].mxu0
    %v849 = vadd.f32 0.0, %v848
    %v850 = vpop.f32.mrb[0].mxu0
    %851 = vmatprep.mubr.f32.mxu0 %v447
    %852 = vmatmul.mubr.f32.gmra.mrb[0].mxu0 %v445
    %v853 = vpop.f32.mrb[0].mxu0
    %v854 = vadd.f32 0.0, %v853
    %v855 = vpop.f32.mrb[0].mxu0
    %856 = vdwg.mxu0
    %857 = vmatprep.subr.mxu0 0.0
    %858 = vmatpush1.msra.mxu0 %v548
    %859 = vmatprep.subr.mxu0 0.0
    %860 = vmatpush1.msra.mxu0 %v551
    %861 = vmatprep.subr.mxu0 0.0
    %862 = vmatpush1.msra.mxu0 %v554
    %863 = vmatprep.subr.mxu0 0.0
    %864 = vmatpush1.msra.mxu0 %v557
    %865 = vmatprep.subr.mxu0 0.0
    %866 = vmatpush1.msra.mxu0 %v560
    %867 = vmatprep.subr.mxu0 0.0
    %868 = vmatpush1.msra.mxu0 %v563
    %869 = vmatprep.subr.mxu0 0.0
    %870 = vmatpush1.msra.mxu0 %v566
    %871 = vmatprep.subr.mxu0 0.0
    %872 = vmatpush1.msra.mxu0 %v569
    %873 = vmatprep.subr.mxu0 0.0
    %874 = vmatpush1.msra.mxu0 %v572
    %875 = vmatprep.subr.mxu0 0.0
    %876 = vmatpush1.msra.mxu0 %v575
    %877 = vmatprep.subr.mxu0 0.0
    %878 = vmatpush1.msra.mxu0 %v578
    %879 = vmatprep.subr.mxu0 0.0
    %880 = vmatpush1.msra.mxu0 %v581
    %881 = vmatprep.subr.mxu0 0.0
    %882 = vmatpush1.msra.mxu0 %v584
    %883 = vmatprep.subr.mxu0 0.0
    %884 = vmatpush1.msra.mxu0 %v587
    %885 = vmatprep.subr.mxu0 0.0
    %886 = vmatpush1.msra.mxu0 %v590
    %887 = vmatprep.subr.mxu0 0.0
    %888 = vmatpush1.msra.mxu0 %v593
    %889 = vmatprep.subr.mxu0 0.0
    %890 = vmatpush1.msra.mxu0 0.0
    %891 = vmatprep.subr.mxu0 0.0
    %892 = vmatpush1.msra.mxu0 0.0
    %893 = vmatprep.subr.mxu0 0.0
    %894 = vmatpush1.msra.mxu0 0.0
    %895 = vmatprep.subr.mxu0 0.0
    %896 = vmatpush1.msra.mxu0 0.0
    %897 = vmatprep.subr.mxu0 0.0
    %898 = vmatpush1.msra.mxu0 0.0
    %899 = vmatprep.subr.mxu0 0.0
    %900 = vmatpush1.msra.mxu0 0.0
    %901 = vmatprep.subr.mxu0 0.0
    %902 = vmatpush1.msra.mxu0 0.0
    %903 = vmatprep.subr.mxu0 0.0
    %904 = vmatpush1.msra.mxu0 0.0
    %905 = vmatprep.subr.mxu0 0.0
    %906 = vmatpush1.msra.mxu0 0.0
    %907 = vmatprep.subr.mxu0 0.0
    %908 = vmatpush1.msra.mxu0 0.0
    %909 = vmatprep.subr.mxu0 0.0
    %910 = vmatpush1.msra.mxu0 0.0
    %911 = vmatprep.subr.mxu0 0.0
    %912 = vmatpush1.msra.mxu0 0.0
    %913 = vmatprep.subr.mxu0 0.0
    %914 = vmatpush1.msra.mxu0 0.0
    %915 = vmatprep.subr.mxu0 0.0
    %916 = vmatpush1.msra.mxu0 0.0
    %917 = vmatprep.subr.mxu0 0.0
    %918 = vmatpush1.msra.mxu0 0.0
    %919 = vmatprep.subr.mxu0 0.0
    %920 = vmatpush1.msra.mxu0 0.0
    %921 = vmatprep.mubr.f32.mxu0 0.0
    %922 = vmatmul.mubr.f32.gmra.mrb[0].mxu0 %v431
    %v923 = vpop.f32.mrb[0].mxu0
    %v924 = vadd.f32 %v839, %v923
    %v925 = vpop.f32.mrb[0].mxu0
    %926 = vmatprep.mubr.f32.mxu0 0.0
    %927 = vmatmul.mubr.f32.gmra.mrb[0].mxu0 %v437
    %v928 = vpop.f32.mrb[0].mxu0
    %v929 = vadd.f32 %v844, %v928
    %v930 = vpop.f32.mrb[0].mxu0
    %931 = vmatprep.mubr.f32.mxu0 0.0
    %932 = vmatmul.mubr.f32.gmra.mrb[0].mxu0 %v443
    %v933 = vpop.f32.mrb[0].mxu0
    %v934 = vadd.f32 %v849, %v933
    %v935 = vpop.f32.mrb[0].mxu0
    %936 = vmatprep.mubr.f32.mxu0 0.0
    %937 = vmatmul.mubr.f32.gmra.mrb[0].mxu0 %v449
    %v938 = vpop.f32.mrb[0].mxu0
    %v939 = vadd.f32 %v854, %v938
    %v940 = vpop.f32.mrb[0].mxu0
    %941 = vdwg.mxu0
    %v942 = vmax.f32 %v750, 1e-20
    %v943 = vmax.f32 %v752, 1e-20
    %v944 = vmax.f32 %v924, 1e-20
    %v945 = vmax.f32 %v756, 1e-20
    %v946 = vmax.f32 %v758, 1e-20
    %v947 = vmax.f32 %v929, 1e-20
    %v948 = vmax.f32 %v762, 1e-20
    %v949 = vmax.f32 %v764, 1e-20
    %v950 = vmax.f32 %v934, 1e-20
    %v951 = vmax.f32 %v768, 1e-20
    %v952 = vmax.f32 %v770, 1e-20
    %v953 = vmax.f32 %v939, 1e-20
    %v954 = vrcp.pop %v942
    %v955 = vrcp.pop %v943
    %v956 = vrcp.pop %v944
    %v957 = vrcp.pop %v945
    %v958 = vrcp.pop %v946
    %v959 = vrcp.pop %v947
    %v960 = vrcp.pop %v948
    %v961 = vrcp.pop %v949
    %v962 = vrcp.pop %v950
    %v963 = vrcp.pop %v951
    %v964 = vrcp.pop %v952
    %v965 = vrcp.pop %v953
    %v966 = vmul.f32 %v427, %v954
    %v967 = vmul.f32 %v429, %v955
    %v968 = vmul.f32 %v431, %v956
    %v969 = vmul.f32 %v433, %v957
    %v970 = vmul.f32 %v435, %v958
    %v971 = vmul.f32 %v437, %v959
    %v972 = vmul.f32 %v439, %v960
    %v973 = vmul.f32 %v441, %v961
    %v974 = vmul.f32 %v443, %v962
    %v975 = vmul.f32 %v445, %v963
    %v976 = vmul.f32 %v447, %v964
    %v977 = vmul.f32 %v449, %v965
    %v978 = vsel %vm371, %v966, %v260
    %v979 = vsel %vm372, %v967, %v262
    %v980 = vsel %vm373, %v968, %v349
    %v981 = vsel %vm371, %v969, %v266
    %v982 = vsel %vm372, %v970, %v268
    %v983 = vsel %vm373, %v971, %v354
    %v984 = vsel %vm371, %v972, %v272
    %v985 = vsel %vm372, %v973, %v274
    %v986 = vsel %vm373, %v974, %v359
    %v987 = vsel %vm371, %v975, %v278
    %v988 = vsel %vm372, %v976, %v280
    %v989 = vsel %vm373, %v977, %v364
    %990 = vst [vmem:[#allocation9] sm:$0xff] %v978
    %991 = vst [vmem:[#allocation9 + $0x8] sm:$0xff] %v979
    %992 = vst [vmem:[#allocation9 + $0x10] sm:$0xff] %v980
    %993 = vst [vmem:[#allocation9 + $0x18] sm:$0xff] %v981
    %994 = vst [vmem:[#allocation9 + $0x20] sm:$0xff] %v982
    %995 = vst [vmem:[#allocation9 + $0x28] sm:$0xff] %v983
    %996 = vst [vmem:[#allocation9 + $0x30] sm:$0xff] %v984
    %997 = vst [vmem:[#allocation9 + $0x38] sm:$0xff] %v985
    %998 = vst [vmem:[#allocation9 + $0x40] sm:$0xff] %v986
    %999 = vst [vmem:[#allocation9 + $0x48] sm:$0xff] %v987
    %1000 = vst [vmem:[#allocation9 + $0x50] sm:$0xff] %v988
    %1001 = vst [vmem:[#allocation9 + $0x58] sm:$0xff] %v989
    // Predicated region
    $region38: #{tpu_custom_call.1} parent=1 // pred_check
      _
    $region39: #{tpu_custom_call.1} parent=1 // pred_check_branch
      %1003 = sbr.rel (0) target = $region41
    $region40: #{tpu_custom_call.1} parent=1 // pred_region
      %s1005 = ssub.s32 512, 512
      %1006 = vsyncadd [#allocation4], %s1005
      %s1007 = sshll.u32 [#allocation8], 4
      %s1008 = int_to_ptr.vmem [resolvable:$true] %s1007
      %1013 = dma.vmem_to_hbm [thread:$0]  %s1008, 512, %s6, [#allocation4], 128, 128, 8
    $region41: #{tpu_custom_call.1} parent=1 // pred_fallthru
      _
    // Predicated region
    $region42: #{tpu_custom_call.1} parent=1 // pred_check
      _
    $region43: #{tpu_custom_call.1} parent=1 // pred_check_branch
      %1015 = sbr.rel (0) target = $region45
    $region44: #{tpu_custom_call.1} parent=1 // pred_region
      %s1017 = ssub.s32 1536, 1536
      %1018 = vsyncadd [#allocation10], %s1017
      %s1019 = sshll.u32 [#allocation9], 4
      %s1020 = int_to_ptr.vmem [resolvable:$true] %s1019
      %1025 = dma.vmem_to_hbm [thread:$0]  %s1020, 1536, %s7, [#allocation10], 384, 384, 24
    $region45: #{tpu_custom_call.1} parent=1 // pred_fallthru
      _
    // Predicated region
    $region46: #{tpu_custom_call.1} parent=1 // pred_check
      _
    $region47: #{tpu_custom_call.1} parent=1 // pred_check_branch
      %1027 = sbr.rel (0) target = $region49
    $region48: #{tpu_custom_call.1} parent=1 // pred_region
      %1028 = dma.done [#allocation4], 512
    $region49: #{tpu_custom_call.1} parent=1 // pred_fallthru
      _
    // Predicated region
    $region50: #{tpu_custom_call.1} parent=1 // pred_check
      _
    $region51: #{tpu_custom_call.1} parent=1 // pred_check_branch
      %1030 = sbr.rel (0) target = $region53
    $region52: #{tpu_custom_call.1} parent=1 // pred_region
      %1031 = dma.done [#allocation10], 1536
    $region53: #{tpu_custom_call.1} parent=1 // pred_fallthru
      _
    %1032 = vsyncpa [#allocation3], 1
    %1033 = vsyncpa [#allocation6], 1
    %1034 = vsyncpa [#allocation4], 1
    %1035 = vsyncpa [#allocation10], 1

</llo_original>
